<compile_context>
chip_gen: v6e
topology: v6e:2x2x1
jax: 0.10.0
libtpu: 0.0.40
codegen_flags: <defaults>
</compile_context>

<pallas_src>
import functools
import numpy as np
import jax
import jax.numpy as jnp
from jax import lax
from jax.experimental import pallas as pl
from jax.experimental.pallas import tpu as pltpu

LANE = 128
_VMEM_LIMIT_CACHE = []


def _round_up(x, m):
    return (x + m - 1) // m * m


def _vmem_limit_bytes():
    """~80% of physical per-core VMEM (64 MiB on v7x, 128 MiB on v5e/v6e)."""
    if not _VMEM_LIMIT_CACHE:
        try:
            cap = int(pltpu.get_tpu_info().vmem_capacity_bytes)
            limit = cap * 4 // 5
        except Exception:
            limit = 48 * 1024 * 1024          # conservative, valid on every generation
        _VMEM_LIMIT_CACHE.append(limit)
    return _VMEM_LIMIT_CACHE[0]


def _pick_tile(m, max_tile, prefer_multi):
    """Largest sublane-aligned (mult-of-8) divisor of m that is <= max_tile.

    prefer_multi additionally asks for >= 2 grid steps when possible so the
    'parallel' grid keeps both v7x TensorCores busy.
    """
    cands = [t for t in range(8, min(m, max_tile) + 1, 8) if m % t == 0]
    if not cands:
        return m
    if prefer_multi:
        multi = [t for t in cands if m // t >= 2]
        if multi:
            return max(multi)
    return max(cands)


# ---------------------------------------------------------------------------
# Pallas kernels
# ---------------------------------------------------------------------------

def _down_kernel(p_ref, w_ref, o_ref):
    """Conv2d-as-GEMM (LeakyReLU already applied pre-im2col in the wrapper).

    p: (tm, K) bf16 im2col patches; w: (K, Cpad) bf16 zero-padded to a 128-multiple of
    columns (lane-dense output stores); o: (tm, Cpad) bf16; f32 MXU accumulation.
    """
    o_ref[...] = jnp.dot(p_ref[...], w_ref[...],
                         preferred_element_type=jnp.float32).astype(o_ref.dtype)


def _up_bn_kernel(p_ref, w_ref, gamma_ref, beta_ref, o_ref,
                  z_buf, sum_buf, m2_buf, mean_buf, scale_buf, shift_buf,
                  *, cg, inv_count):
    """Fused ConvTranspose-as-subpixel-GEMM + BatchNorm2d (training-mode batch stats).

    Grid = (phase, tile), both 'arbitrary' (phase outer, tile inner):
      phase 0: z = patches @ W (bf16 in, f32 acc) stored into the resident VMEM scratch
               z_buf; per-channel sums accumulated (folded over the 4 sub-pixel groups).
      phase 1: mean finalized once; exact centered sum-of-squares accumulated from z_buf
               (two-pass variance, no catastrophic cancellation).
      phase 2: scale/shift finalized once; z_buf normalized straight to the output tile
               -- z never touches HBM.
    Columns: 4 sub-pixel groups x cg (=round_up(outer_nc,128)) lanes each, so every group
    fold / store below is a 128-aligned static lane slice.
    """
    ph = pl.program_id(0)
    i = pl.program_id(1)

    @pl.when(ph == 0)
    def _():
        @pl.when(i == 0)
        def _():
            sum_buf[...] = jnp.zeros_like(sum_buf)
            m2_buf[...] = jnp.zeros_like(m2_buf)

        z = jnp.dot(p_ref[...], w_ref[...], preferred_element_type=jnp.float32)
        z_buf[i] = z
        s = jnp.sum(z, axis=0, keepdims=True)                       # (1, 4*cg)
        sum_buf[...] += (s[:, 0:cg] + s[:, cg:2 * cg]
                         + s[:, 2 * cg:3 * cg] + s[:, 3 * cg:4 * cg])

    @pl.when(ph == 1)
    def _():
        @pl.when(i == 0)
        def _():
            mean_buf[...] = sum_buf[...] * inv_count

        z = z_buf[i]
        mean = mean_buf[...]
        acc = jnp.zeros_like(mean)
        for g in range(4):                                          # static unroll
            dz = z[:, g * cg:(g + 1) * cg] - mean
            acc = acc + jnp.sum(dz * dz, axis=0, keepdims=True)
        m2_buf[...] += acc

    @pl.when(ph == 2)
    def _():
        @pl.when(i == 0)
        def _():
            var = m2_buf[...] * inv_count                           # biased var (torch BN train)
            scale = gamma_ref[...] * lax.rsqrt(var + 1e-5)
            scale_buf[...] = scale
            shift_buf[...] = beta_ref[...] - mean_buf[...] * scale

        z = z_buf[i]
        scale = scale_buf[...]
        shift = shift_buf[...]
        for g in range(4):                                          # lane-dense stores
            o_ref[:, g * cg:(g + 1) * cg] = z[:, g * cg:(g + 1) * cg] * scale + shift


# ---------------------------------------------------------------------------
# pallas_call wrappers
# ---------------------------------------------------------------------------

def down_conv(patches, w_mat, *, tm):
    M, K = patches.shape
    Cp = w_mat.shape[1]
    assert M % tm == 0 and Cp % LANE == 0
    cost = pl.CostEstimate(flops=2 * M * K * Cp, transcendentals=0,
                           bytes_accessed=2 * (M * K + K * Cp + M * Cp))
    return pl.pallas_call(
        _down_kernel,
        out_shape=jax.ShapeDtypeStruct((M, Cp), jnp.bfloat16),
        grid=(M // tm,),
        in_specs=[
            pl.BlockSpec((tm, K), lambda i: (i, 0)),
            pl.BlockSpec((K, Cp), lambda i: (0, 0)),       # grid-invariant weight
        ],
        out_specs=pl.BlockSpec((tm, Cp), lambda i: (i, 0)),
        compiler_params=pltpu.CompilerParams(
            dimension_semantics=("parallel",),
            vmem_limit_bytes=_vmem_limit_bytes()),
        cost_estimate=cost,
    )(patches, w_mat)


def up_conv_bn(patches, w_mat, gamma_cols, beta_cols, *, tm, cg):
    M, K = patches.shape
    Cp = w_mat.shape[1]
    assert Cp == 4 * cg and M % tm == 0 and cg % LANE == 0
    nt = M // tm
    kernel = functools.partial(_up_bn_kernel, cg=cg, inv_count=1.0 / (4.0 * M))
    cost = pl.CostEstimate(flops=2 * M * K * Cp + 10 * M * Cp, transcendentals=cg,
                           bytes_accessed=2 * (M * K + K * Cp) + 4 * M * Cp)
    return pl.pallas_call(
        kernel,
        out_shape=jax.ShapeDtypeStruct((M, Cp), jnp.float32),
        grid=(3, nt),
        in_specs=[
            # Patches only feed phase 0; clamp the block index afterwards so the
            # pipeline never re-fetches the 9x-inflated patch matrix from HBM.
            pl.BlockSpec((tm, K), lambda ph, i: (jnp.where(ph == 0, i, nt - 1), 0)),
            pl.BlockSpec((K, Cp), lambda ph, i: (0, 0)),
            pl.BlockSpec((1, cg), lambda ph, i: (0, 0)),
            pl.BlockSpec((1, cg), lambda ph, i: (0, 0)),
        ],
        # Output is only written in phase 2; park the block index at 0 before that so
        # no uninitialized buffer is ever written back.
        out_specs=pl.BlockSpec((tm, Cp), lambda ph, i: (jnp.where(ph == 2, i, 0), 0)),
        scratch_shapes=[
            pltpu.VMEM((nt, tm, Cp), jnp.float32),    # resident pre-BN activations z
            pltpu.VMEM((1, cg), jnp.float32),         # per-channel sum
            pltpu.VMEM((1, cg), jnp.float32),         # per-channel centered sum of squares
            pltpu.VMEM((1, cg), jnp.float32),         # mean
            pltpu.VMEM((1, cg), jnp.float32),         # scale
            pltpu.VMEM((1, cg), jnp.float32),         # shift
        ],
        compiler_params=pltpu.CompilerParams(
            dimension_semantics=("arbitrary", "arbitrary"),
            vmem_limit_bytes=_vmem_limit_bytes()),
        cost_estimate=cost,
    )(patches, w_mat, gamma_cols, beta_cols)


# ---------------------------------------------------------------------------
# Plain-JAX glue: im2col + weight packing (layout plumbing only)
# ---------------------------------------------------------------------------

def _im2col(x_nhwc, k, stride, pad):
    N, H, W, C = x_nhwc.shape
    Hout = (H + 2 * pad - k) // stride + 1
    Wout = (W + 2 * pad - k) // stride + 1
    xp = jnp.pad(x_nhwc, ((0, 0), (pad, pad), (pad, pad), (0, 0)))
    cols = []
    for kh in range(k):
        for kw in range(k):
            cols.append(
                lax.slice(
                    xp,
                    (0, kh, kw, 0),
                    (N, kh + stride * (Hout - 1) + 1, kw + stride * (Wout - 1) + 1, C),
                    (1, stride, stride, 1)))
    col = jnp.stack(cols, axis=3)                      # (N, Hout, Wout, k*k, C)
    return col.reshape(N * Hout * Wout, k * k * C), (N, Hout, Wout)


def _pack_down_weight(wd, cpad):
    """Conv2d weight (O, I, 4, 4) -> (16*I, cpad): channel-fastest rows, zero-padded cols."""
    inner_nc, cin = wd.shape[0], wd.shape[1]
    w = jnp.transpose(wd, (2, 3, 1, 0)).reshape(16 * cin, inner_nc)
    return jnp.pad(w, ((0, 0), (0, cpad - inner_nc)))


def _pack_up_weight_subpixel(wu, cg):
    """ConvTranspose2d(k=4,s=2,p=1) weight (Cin, Cout, 4, 4) packed as 4 sub-pixel 2x2
    convolutions over a shared 3x3 window: (9*Cin, 4*cg).  Column group g = ry*2 + rx
    (each padded to cg = round_up(Cout, 128) lanes, so group folds stay vreg-aligned)
    produces output pixel (2*my+ry, 2*mx+rx).  K drops 256 -> 144 and no dilation zeros
    are ever loaded or multiplied."""
    cin, cout = wu.shape[0], wu.shape[1]
    taps = ((3, 1), (2, 0))        # kernel tap for (output parity r, window offset a)
    w3 = jnp.zeros((3, 3, cin, 4, cg), jnp.float32)
    for ry in range(2):
        for rx in range(2):
            g = ry * 2 + rx
            for a in range(2):
                for b in range(2):
                    w3 = w3.at[ry + a, rx + b, :, g, :cout].set(
                        wu[:, :, taps[ry][a], taps[rx][b]])
    return w3.reshape(9 * cin, 4 * cg)


# ---------------------------------------------------------------------------
# Forward
# ---------------------------------------------------------------------------

def unet_innermost_forward(x_nchw, noise_nchw, params):
    """Pallas implementation of the innermost UnetSkipConnectionBlock forward."""
    N, Cin, H, W = x_nchw.shape
    inner_nc = params["wd"].shape[0]
    outer_nc = params["wu"].shape[1]
    cd = _round_up(inner_nc, LANE)            # down-output columns (lane-dense)
    cg = _round_up(outer_nc, LANE)            # per-sub-pixel-group columns (lane-dense)

    x = jnp.transpose(x_nchw, (0, 2, 3, 1))                  # NHWC; skip path stays f32

    # ---- down: LeakyReLU(0.2) applied ONCE on x, Conv2d(k=4,s=2,p=1) as GEMM ----
    xa = jnp.maximum(x, 0.2 * x).astype(jnp.bfloat16)        # pre-im2col: 1x work, not 4x
    pd, (_, Hd, Wd) = _im2col(xa, k=4, stride=2, pad=1)      # (M, 16*Cin) bf16
    M = pd.shape[0]
    tm_d = _pick_tile(M, 256, prefer_multi=True)             # >=2 even steps for 'parallel'
    wd_mat = _pack_down_weight(params["wd"], cd).astype(jnp.bfloat16)
    d = down_conv(pd, wd_mat, tm=tm_d)                        # (M, cd) bf16, lane-dense
    d = d[:, :inner_nc].reshape(N, Hd, Wd, inner_nc)

    # ---- cat(down(x), noise), ReLU applied ONCE, 3x3 window im2col ----
    noise = jnp.transpose(noise_nchw, (0, 2, 3, 1)).astype(jnp.bfloat16)
    c = jnp.maximum(jnp.concatenate([d, noise], axis=-1), 0)  # (N,Hd,Wd,2*inner_nc) bf16
    pu, _ = _im2col(c, k=3, stride=1, pad=1)                   # (M, 18*inner_nc) bf16

    # ---- fused up: ConvTranspose2d(k=4,s=2,p=1) as sub-pixel GEMM + BatchNorm2d ----
    wu_mat = _pack_up_weight_subpixel(params["wu"], cg).astype(jnp.bfloat16)
    gamma_cols = jnp.pad(params["gamma"], (0, cg - outer_nc)).reshape(1, cg)
    beta_cols = jnp.pad(params["beta"], (0, cg - outer_nc)).reshape(1, cg)
    tm_u = _pick_tile(M, 512, prefer_multi=False)              # biggest tile; grid is sequential
    u_cols = up_conv_bn(pu, wu_mat, gamma_cols, beta_cols, tm=tm_u, cg=cg)  # (M, 4*cg) f32

    # ---- sub-pixel shuffle back to spatial, outer skip connection ----
    u = u_cols.reshape(N, Hd, Wd, 4, cg)[..., :outer_nc].reshape(N, Hd, Wd, 2, 2, outer_nc)
    u = u.transpose(0, 1, 3, 2, 4, 5).reshape(N, 2 * Hd, 2 * Wd, outer_nc)
    out = jnp.concatenate([u, x], axis=-1)
    return jnp.transpose(out, (0, 3, 1, 2))                    # back to NCHW


# ---------------------------------------------------------------------------
# Pure-JAX reference (mirrors the PyTorch forward exactly, f32 everywhere)
# ---------------------------------------------------------------------------

def reference_forward(x, noise, params):
    prec = lax.Precision.HIGHEST
    lrelu = lambda v: jnp.where(v >= 0, v, 0.2 * v)
    d = lax.conv_general_dilated(
        lrelu(x), params["wd"], (2, 2), ((1, 1), (1, 1)),
        dimension_numbers=("NCHW", "OIHW", "NCHW"), precision=prec)
    c = jnp.maximum(jnp.concatenate([d, noise], axis=1), 0.0)
    w_flip = jnp.transpose(params["wu"], (1, 0, 2, 3))[:, :, ::-1, ::-1]
    u = lax.conv_general_dilated(
        c, w_flip, (1, 1), ((2, 2), (2, 2)), lhs_dilation=(2, 2),
        dimension_numbers=("NCHW", "OIHW", "NCHW"), precision=prec)
    mean = u.mean(axis=(0, 2, 3), keepdims=True)
    var = ((u - mean) ** 2).mean(axis=(0, 2, 3), keepdims=True)
    u = (u - mean) * lax.rsqrt(var + 1e-5)
    u = u * params["gamma"].reshape(1, -1, 1, 1) + params["beta"].reshape(1, -1, 1, 1)
    return jnp.concatenate([u, x], axis=1)


# ---------------------------------------------------------------------------
# Main
# ---------------------------------------------------------------------------

if __name__ == "__main__":
    key = jax.random.PRNGKey(0)
    N, H, W = 2, 16, 16
    outer_nc = 4
    input_nc = outer_nc          # input_nc=None in the module => input_nc = outer_nc
    inner_nc = 8

    k1, k2, k3, k4, k5, k6 = jax.random.split(key, 6)
    x = jax.random.normal(k1, (N, input_nc, H, W), jnp.float32)
    noise = jax.random.normal(k2, (N, inner_nc, H // 2, W // 2), jnp.float32) * 0.0007

    params = dict(
        # Conv2d(input_nc, inner_nc, 4, 4), bias=False (BatchNorm norm layer)
        wd=jax.random.normal(k3, (inner_nc, input_nc, 4, 4), jnp.float32) * 0.1,
        # ConvTranspose2d(2*inner_nc, outer_nc, 4, 4), bias=False
        wu=jax.random.normal(k4, (inner_nc * 2, outer_nc, 4, 4), jnp.float32) * 0.1,
        # BatchNorm2d(outer_nc) affine params
        gamma=1.0 + 0.1 * jax.random.normal(k5, (outer_nc,), jnp.float32),
        beta=0.1 * jax.random.normal(k6, (outer_nc,), jnp.float32),
    )

    out = jax.jit(unet_innermost_forward)(x, noise, params)
    out = jax.block_until_ready(out)

    assert out.shape == (N, outer_nc + input_nc, H, W), out.shape
    ref = reference_forward(x, noise, params)
    # Tolerance accounts for the deliberate bf16 MXU inputs (f32 accumulation, exact
    # two-pass BN statistics in f32).
    np.testing.assert_allclose(np.asarray(out), np.asarray(ref), rtol=5e-2, atol=5e-2)

    print("KERNEL_OK")
</pallas_src>

<mosaic_0001>
module attributes {stable_mosaic.version = 11 : i64} {
  func.func @_down_kernel(%arg0: i32, %arg1: memref<64x64xbf16, #tpu.memory_space<vmem>>, %arg2: memref<64x128xbf16, #tpu.memory_space<vmem>>, %arg3: memref<64x128xbf16, #tpu.memory_space<vmem>>) attributes {dimension_semantics = [#tpu.dimension_semantics<parallel>], iteration_bounds = array<i64: 2>, scalar_prefetch = 0 : i64, scratch_operands = 0 : i64, tpu.core_type = #tpu.core_type<tc>, window_params = [{transform_indices = @transform_0, window_bounds = array<i64: 64, 64>}, {pipeline_mode = #tpu.pipeline_mode<synchronous>, transform_indices = @transform_1, window_bounds = array<i64: 64, 128>}, {transform_indices = @transform_2, window_bounds = array<i64: 64, 128>}]} {
    %c0 = arith.constant 0 : index
    %c0_0 = arith.constant 0 : index
    %0 = vector.load %arg1[%c0, %c0_0] : memref<64x64xbf16, #tpu.memory_space<vmem>>, vector<64x64xbf16>
    %c0_1 = arith.constant 0 : index
    %c0_2 = arith.constant 0 : index
    %1 = vector.load %arg2[%c0_1, %c0_2] : memref<64x128xbf16, #tpu.memory_space<vmem>>, vector<64x128xbf16>
    %cst = arith.constant dense<0.000000e+00> : vector<64x128xf32>
    %2 = tpu.matmul %0, %1, %cst {dimension_numbers = #tpu.dot_dimension_numbers<[1], [0], [0], [1], [0, 0, 1, 1], [], []>} : vector<64x64xbf16>, vector<64x128xbf16>, vector<64x128xf32> -> vector<64x128xf32>
    %3 = arith.truncf %2 : vector<64x128xf32> to vector<64x128xbf16>
    %c0_3 = arith.constant 0 : index
    %c0_4 = arith.constant 0 : index
    %4 = vector.load %arg3[%c0_3, %c0_4] : memref<64x128xbf16, #tpu.memory_space<vmem>>, vector<64x128xbf16>
    tpu.vector_store %arg3[%c0_3, %c0_4], %3 {strides = array<i32>} : memref<64x128xbf16, #tpu.memory_space<vmem>>, vector<64x128xbf16>,
    return
  }
  func.func @transform_0(%arg0: i32) -> (i32, i32) {
    %c0_i32 = arith.constant 0 : i32
    %c0_i32_0 = arith.constant 0 : i32
    return %arg0, %c0_i32 : i32, i32
  }
  func.func @transform_1(%arg0: i32) -> (i32, i32) {
    %c0_i32 = arith.constant 0 : i32
    %c0_i32_0 = arith.constant 0 : i32
    %c0_i32_1 = arith.constant 0 : i32
    return %c0_i32, %c0_i32_0 : i32, i32
  }
  func.func @transform_2(%arg0: i32) -> (i32, i32) {
    %c0_i32 = arith.constant 0 : i32
    %c0_i32_0 = arith.constant 0 : i32
    return %arg0, %c0_i32 : i32, i32
  }
}

module attributes {stable_mosaic.version = 11 : i64} {
  func.func @_up_bn_kernel(%arg0: i32, %arg1: i32, %arg2: memref<128x144xbf16, #tpu.memory_space<vmem>>, %arg3: memref<144x512xbf16, #tpu.memory_space<vmem>>, %arg4: memref<1x128xf32, #tpu.memory_space<vmem>>, %arg5: memref<1x128xf32, #tpu.memory_space<vmem>>, %arg6: memref<128x512xf32, #tpu.memory_space<vmem>>, %arg7: memref<1x128x512xf32, #tpu.memory_space<vmem>>, %arg8: memref<1x128xf32, #tpu.memory_space<vmem>>, %arg9: memref<1x128xf32, #tpu.memory_space<vmem>>, %arg10: memref<1x128xf32, #tpu.memory_space<vmem>>, %arg11: memref<1x128xf32, #tpu.memory_space<vmem>>, %arg12: memref<1x128xf32, #tpu.memory_space<vmem>>) attributes {dimension_semantics = [#tpu.dimension_semantics<arbitrary>, #tpu.dimension_semantics<arbitrary>], iteration_bounds = array<i64: 3, 1>, scalar_prefetch = 0 : i64, scratch_operands = 6 : i64, tpu.core_type = #tpu.core_type<tc>, window_params = [{transform_indices = @transform_0, window_bounds = array<i64: 128, 144>}, {pipeline_mode = #tpu.pipeline_mode<synchronous>, transform_indices = @transform_1, window_bounds = array<i64: 144, 512>}, {pipeline_mode = #tpu.pipeline_mode<synchronous>, transform_indices = @transform_2, window_bounds = array<i64: 1, 128>}, {pipeline_mode = #tpu.pipeline_mode<synchronous>, transform_indices = @transform_3, window_bounds = array<i64: 1, 128>}, {transform_indices = @transform_4, window_bounds = array<i64: 128, 512>}]} {
    %c0_i32 = arith.constant 0 : i32
    %0 = arith.cmpi eq, %arg0, %c0_i32 : i32
    %1 = arith.extui %0 : i1 to i32
    %c0_i32_0 = arith.constant 0 : i32
    %2 = arith.cmpi ne, %1, %c0_i32_0 : i32
    scf.if %2 {
      %c0_i32_3 = arith.constant 0 : i32
      %9 = arith.cmpi eq, %arg1, %c0_i32_3 : i32
      %10 = arith.extui %9 : i1 to i32
      %c0_i32_4 = arith.constant 0 : i32
      %11 = arith.cmpi ne, %10, %c0_i32_4 : i32
      scf.if %11 {
        %cst_15 = arith.constant 0.000000e+00 : f32
        %31 = vector.broadcast %cst_15 : f32 to vector<1x128xf32>
        %c0_16 = arith.constant 0 : index
        %c0_17 = arith.constant 0 : index
        %32 = vector.load %arg8[%c0_16, %c0_17] : memref<1x128xf32, #tpu.memory_space<vmem>>, vector<1x128xf32>
        tpu.vector_store %arg8[%c0_16, %c0_17], %31 {strides = array<i32>} : memref<1x128xf32, #tpu.memory_space<vmem>>, vector<1x128xf32>,
        %cst_18 = arith.constant 0.000000e+00 : f32
        %33 = vector.broadcast %cst_18 : f32 to vector<1x128xf32>
        %c0_19 = arith.constant 0 : index
        %c0_20 = arith.constant 0 : index
        %34 = vector.load %arg9[%c0_19, %c0_20] : memref<1x128xf32, #tpu.memory_space<vmem>>, vector<1x128xf32>
        tpu.vector_store %arg9[%c0_19, %c0_20], %33 {strides = array<i32>} : memref<1x128xf32, #tpu.memory_space<vmem>>, vector<1x128xf32>,
      } else {
      }
      %c0 = arith.constant 0 : index
      %c0_5 = arith.constant 0 : index
      %12 = vector.load %arg2[%c0, %c0_5] : memref<128x144xbf16, #tpu.memory_space<vmem>>, vector<128x144xbf16>
      %c0_6 = arith.constant 0 : index
      %c0_7 = arith.constant 0 : index
      %13 = vector.load %arg3[%c0_6, %c0_7] : memref<144x512xbf16, #tpu.memory_space<vmem>>, vector<144x512xbf16>
      %cst = arith.constant dense<0.000000e+00> : vector<128x512xf32>
      %14 = tpu.matmul %12, %13, %cst {dimension_numbers = #tpu.dot_dimension_numbers<[1], [0], [0], [1], [0, 0, 1, 1], [], []>} : vector<128x144xbf16>, vector<144x512xbf16>, vector<128x512xf32> -> vector<128x512xf32>
      %15 = arith.index_cast %arg1 : i32 to index
      %c0_8 = arith.constant 0 : index
      %c0_9 = arith.constant 0 : index
      %16 = vector.load %arg7[%15, %c0_8, %c0_9] : memref<1x128x512xf32, #tpu.memory_space<vmem>>, vector<1x128x512xf32>
      %17 = vector.shape_cast %16 : vector<1x128x512xf32> to vector<128x512xf32>
      %18 = vector.shape_cast %14 : vector<128x512xf32> to vector<1x128x512xf32>
      tpu.vector_store %arg7[%15, %c0_8, %c0_9], %18 {strides = array<i32>} : memref<1x128x512xf32, #tpu.memory_space<vmem>>, vector<1x128x512xf32>,
      %cst_10 = arith.constant dense<0.000000e+00> : vector<512xf32>
      %19 = vector.multi_reduction <add>, %14, %cst_10 [0] : vector<128x512xf32> to vector<512xf32>
      %20 = vector.shape_cast %19 : vector<512xf32> to vector<1x512xf32>
      %c0_11 = arith.constant 0 : index
      %c0_12 = arith.constant 0 : index
      %21 = vector.load %arg8[%c0_11, %c0_12] : memref<1x128xf32, #tpu.memory_space<vmem>>, vector<1x128xf32>
      %22 = vector.extract_strided_slice %20 {offsets = [0, 0], sizes = [1, 128], strides = [1, 1]} : vector<1x512xf32> to vector<1x128xf32>
      %23 = vector.extract_strided_slice %20 {offsets = [0, 128], sizes = [1, 128], strides = [1, 1]} : vector<1x512xf32> to vector<1x128xf32>
      %24 = arith.addf %22, %23 : vector<1x128xf32>
      %25 = vector.extract_strided_slice %20 {offsets = [0, 256], sizes = [1, 128], strides = [1, 1]} : vector<1x512xf32> to vector<1x128xf32>
      %26 = arith.addf %24, %25 : vector<1x128xf32>
      %27 = vector.extract_strided_slice %20 {offsets = [0, 384], sizes = [1, 128], strides = [1, 1]} : vector<1x512xf32> to vector<1x128xf32>
      %28 = arith.addf %26, %27 : vector<1x128xf32>
      %29 = arith.addf %21, %28 : vector<1x128xf32>
      %c0_13 = arith.constant 0 : index
      %c0_14 = arith.constant 0 : index
      %30 = vector.load %arg8[%c0_13, %c0_14] : memref<1x128xf32, #tpu.memory_space<vmem>>, vector<1x128xf32>
      tpu.vector_store %arg8[%c0_13, %c0_14], %29 {strides = array<i32>} : memref<1x128xf32, #tpu.memory_space<vmem>>, vector<1x128xf32>,
    } else {
    }
    %c1_i32 = arith.constant 1 : i32
    %3 = arith.cmpi eq, %arg0, %c1_i32 : i32
    %4 = arith.extui %3 : i1 to i32
    %c0_i32_1 = arith.constant 0 : i32
    %5 = arith.cmpi ne, %4, %c0_i32_1 : i32
    scf.if %5 {
      %c0_i32_3 = arith.constant 0 : i32
      %9 = arith.cmpi eq, %arg1, %c0_i32_3 : i32
      %10 = arith.extui %9 : i1 to i32
      %c0_i32_4 = arith.constant 0 : i32
      %11 = arith.cmpi ne, %10, %c0_i32_4 : i32
      scf.if %11 {
        %c0_16 = arith.constant 0 : index
        %c0_17 = arith.constant 0 : index
        %48 = vector.load %arg8[%c0_16, %c0_17] : memref<1x128xf32, #tpu.memory_space<vmem>>, vector<1x128xf32>
        %cst_18 = arith.constant 0.001953125 : f32
        %49 = vector.broadcast %cst_18 : f32 to vector<1x128xf32>
        %50 = arith.mulf %48, %49 : vector<1x128xf32>
        %c0_19 = arith.constant 0 : index
        %c0_20 = arith.constant 0 : index
        %51 = vector.load %arg10[%c0_19, %c0_20] : memref<1x128xf32, #tpu.memory_space<vmem>>, vector<1x128xf32>
        tpu.vector_store %arg10[%c0_19, %c0_20], %50 {strides = array<i32>} : memref<1x128xf32, #tpu.memory_space<vmem>>, vector<1x128xf32>,
      } else {
      }
      %12 = arith.index_cast %arg1 : i32 to index
      %c0 = arith.constant 0 : index
      %c0_5 = arith.constant 0 : index
      %13 = vector.load %arg7[%12, %c0, %c0_5] : memref<1x128x512xf32, #tpu.memory_space<vmem>>, vector<1x128x512xf32>
      %14 = vector.shape_cast %13 : vector<1x128x512xf32> to vector<128x512xf32>
      %c0_6 = arith.constant 0 : index
      %c0_7 = arith.constant 0 : index
      %15 = vector.load %arg10[%c0_6, %c0_7] : memref<1x128xf32, #tpu.memory_space<vmem>>, vector<1x128xf32>
      %cst = arith.constant 0.000000e+00 : f32
      %16 = vector.broadcast %cst : f32 to vector<1x128xf32>
      %17 = vector.extract_strided_slice %14 {offsets = [0, 0], sizes = [128, 128], strides = [1, 1]} : vector<128x512xf32> to vector<128x128xf32>
      %18 = vector.broadcast %15 : vector<1x128xf32> to vector<128x128xf32>
      %19 = arith.subf %17, %18 : vector<128x128xf32>
      %20 = arith.mulf %19, %19 : vector<128x128xf32>
      %cst_8 = arith.constant dense<0.000000e+00> : vector<128xf32>
      %21 = vector.multi_reduction <add>, %20, %cst_8 [0] : vector<128x128xf32> to vector<128xf32>
      %22 = vector.shape_cast %21 : vector<128xf32> to vector<1x128xf32>
      %23 = arith.addf %16, %22 : vector<1x128xf32>
      %24 = vector.extract_strided_slice %14 {offsets = [0, 128], sizes = [128, 128], strides = [1, 1]} : vector<128x512xf32> to vector<128x128xf32>
      %25 = vector.broadcast %15 : vector<1x128xf32> to vector<128x128xf32>
      %26 = arith.subf %24, %25 : vector<128x128xf32>
      %27 = arith.mulf %26, %26 : vector<128x128xf32>
      %cst_9 = arith.constant dense<0.000000e+00> : vector<128xf32>
      %28 = vector.multi_reduction <add>, %27, %cst_9 [0] : vector<128x128xf32> to vector<128xf32>
      %29 = vector.shape_cast %28 : vector<128xf32> to vector<1x128xf32>
      %30 = arith.addf %23, %29 : vector<1x128xf32>
      %31 = vector.extract_strided_slice %14 {offsets = [0, 256], sizes = [128, 128], strides = [1, 1]} : vector<128x512xf32> to vector<128x128xf32>
      %32 = vector.broadcast %15 : vector<1x128xf32> to vector<128x128xf32>
      %33 = arith.subf %31, %32 : vector<128x128xf32>
      %34 = arith.mulf %33, %33 : vector<128x128xf32>
      %cst_10 = arith.constant dense<0.000000e+00> : vector<128xf32>
      %35 = vector.multi_reduction <add>, %34, %cst_10 [0] : vector<128x128xf32> to vector<128xf32>
      %36 = vector.shape_cast %35 : vector<128xf32> to vector<1x128xf32>
      %37 = arith.addf %30, %36 : vector<1x128xf32>
      %38 = vector.extract_strided_slice %14 {offsets = [0, 384], sizes = [128, 128], strides = [1, 1]} : vector<128x512xf32> to vector<128x128xf32>
      %39 = vector.broadcast %15 : vector<1x128xf32> to vector<128x128xf32>
      %40 = arith.subf %38, %39 : vector<128x128xf32>
      %41 = arith.mulf %40, %40 : vector<128x128xf32>
      %cst_11 = arith.constant dense<0.000000e+00> : vector<128xf32>
      %42 = vector.multi_reduction <add>, %41, %cst_11 [0] : vector<128x128xf32> to vector<128xf32>
      %43 = vector.shape_cast %42 : vector<128xf32> to vector<1x128xf32>
      %44 = arith.addf %37, %43 : vector<1x128xf32>
      %c0_12 = arith.constant 0 : index
      %c0_13 = arith.constant 0 : index
      %45 = vector.load %arg9[%c0_12, %c0_13] : memref<1x128xf32, #tpu.memory_space<vmem>>, vector<1x128xf32>
      %46 = arith.addf %45, %44 : vector<1x128xf32>
      %c0_14 = arith.constant 0 : index
      %c0_15 = arith.constant 0 : index
      %47 = vector.load %arg9[%c0_14, %c0_15] : memref<1x128xf32, #tpu.memory_space<vmem>>, vector<1x128xf32>
      tpu.vector_store %arg9[%c0_14, %c0_15], %46 {strides = array<i32>} : memref<1x128xf32, #tpu.memory_space<vmem>>, vector<1x128xf32>,
    } else {
    }
    %c2_i32 = arith.constant 2 : i32
    %6 = arith.cmpi eq, %arg0, %c2_i32 : i32
    %7 = arith.extui %6 : i1 to i32
    %c0_i32_2 = arith.constant 0 : i32
    %8 = arith.cmpi ne, %7, %c0_i32_2 : i32
    scf.if %8 {
      %c0_i32_3 = arith.constant 0 : i32
      %9 = arith.cmpi eq, %arg1, %c0_i32_3 : i32
      %10 = arith.extui %9 : i1 to i32
      %c0_i32_4 = arith.constant 0 : i32
      %11 = arith.cmpi ne, %10, %c0_i32_4 : i32
      scf.if %11 {
        %c0_15 = arith.constant 0 : index
        %c0_16 = arith.constant 0 : index
        %41 = vector.load %arg9[%c0_15, %c0_16] : memref<1x128xf32, #tpu.memory_space<vmem>>, vector<1x128xf32>
        %cst = arith.constant 0.001953125 : f32
        %42 = vector.broadcast %cst : f32 to vector<1x128xf32>
        %43 = arith.mulf %41, %42 : vector<1x128xf32>
        %c0_17 = arith.constant 0 : index
        %c0_18 = arith.constant 0 : index
        %44 = vector.load %arg4[%c0_17, %c0_18] : memref<1x128xf32, #tpu.memory_space<vmem>>, vector<1x128xf32>
        %cst_19 = arith.constant 9.99999974E-6 : f32
        %45 = vector.broadcast %cst_19 : f32 to vector<1x128xf32>
        %46 = arith.addf %43, %45 : vector<1x128xf32>
        %47 = math.rsqrt %46 : vector<1x128xf32>
        %48 = arith.mulf %44, %47 : vector<1x128xf32>
        %c0_20 = arith.constant 0 : index
        %c0_21 = arith.constant 0 : index
        %49 = vector.load %arg11[%c0_20, %c0_21] : memref<1x128xf32, #tpu.memory_space<vmem>>, vector<1x128xf32>
        tpu.vector_store %arg11[%c0_20, %c0_21], %48 {strides = array<i32>} : memref<1x128xf32, #tpu.memory_space<vmem>>, vector<1x128xf32>,
        %c0_22 = arith.constant 0 : index
        %c0_23 = arith.constant 0 : index
        %50 = vector.load %arg5[%c0_22, %c0_23] : memref<1x128xf32, #tpu.memory_space<vmem>>, vector<1x128xf32>
        %c0_24 = arith.constant 0 : index
        %c0_25 = arith.constant 0 : index
        %51 = vector.load %arg10[%c0_24, %c0_25] : memref<1x128xf32, #tpu.memory_space<vmem>>, vector<1x128xf32>
        %52 = arith.mulf %51, %48 : vector<1x128xf32>
        %53 = arith.subf %50, %52 : vector<1x128xf32>
        %c0_26 = arith.constant 0 : index
        %c0_27 = arith.constant 0 : index
        %54 = vector.load %arg12[%c0_26, %c0_27] : memref<1x128xf32, #tpu.memory_space<vmem>>, vector<1x128xf32>
        tpu.vector_store %arg12[%c0_26, %c0_27], %53 {strides = array<i32>} : memref<1x128xf32, #tpu.memory_space<vmem>>, vector<1x128xf32>,
      } else {
      }
      %12 = arith.index_cast %arg1 : i32 to index
      %c0 = arith.constant 0 : index
      %c0_5 = arith.constant 0 : index
      %13 = vector.load %arg7[%12, %c0, %c0_5] : memref<1x128x512xf32, #tpu.memory_space<vmem>>, vector<1x128x512xf32>
      %14 = vector.shape_cast %13 : vector<1x128x512xf32> to vector<128x512xf32>
      %c0_6 = arith.constant 0 : index
      %c0_7 = arith.constant 0 : index
      %15 = vector.load %arg11[%c0_6, %c0_7] : memref<1x128xf32, #tpu.memory_space<vmem>>, vector<1x128xf32>
      %c0_8 = arith.constant 0 : index
      %c0_9 = arith.constant 0 : index
      %16 = vector.load %arg12[%c0_8, %c0_9] : memref<1x128xf32, #tpu.memory_space<vmem>>, vector<1x128xf32>
      %17 = vector.extract_strided_slice %14 {offsets = [0, 0], sizes = [128, 128], strides = [1, 1]} : vector<128x512xf32> to vector<128x128xf32>
      %18 = vector.broadcast %15 : vector<1x128xf32> to vector<128x128xf32>
      %19 = arith.mulf %17, %18 : vector<128x128xf32>
      %20 = vector.broadcast %16 : vector<1x128xf32> to vector<128x128xf32>
      %21 = arith.addf %19, %20 : vector<128x128xf32>
      %c0_10 = arith.constant 0 : index
      %c0_11 = arith.constant 0 : index
      %22 = vector.load %arg6[%c0_10, %c0_11] : memref<128x512xf32, #tpu.memory_space<vmem>>, vector<128x128xf32>
      tpu.vector_store %arg6[%c0_10, %c0_11], %21 {strides = array<i32>} : memref<128x512xf32, #tpu.memory_space<vmem>>, vector<128x128xf32>,
      %23 = vector.extract_strided_slice %14 {offsets = [0, 128], sizes = [128, 128], strides = [1, 1]} : vector<128x512xf32> to vector<128x128xf32>
      %24 = vector.broadcast %15 : vector<1x128xf32> to vector<128x128xf32>
      %25 = arith.mulf %23, %24 : vector<128x128xf32>
      %26 = vector.broadcast %16 : vector<1x128xf32> to vector<128x128xf32>
      %27 = arith.addf %25, %26 : vector<128x128xf32>
      %c0_12 = arith.constant 0 : index
      %c128 = arith.constant 128 : index
      %28 = vector.load %arg6[%c0_12, %c128] : memref<128x512xf32, #tpu.memory_space<vmem>>, vector<128x128xf32>
      tpu.vector_store %arg6[%c0_12, %c128], %27 {strides = array<i32>} : memref<128x512xf32, #tpu.memory_space<vmem>>, vector<128x128xf32>,
      %29 = vector.extract_strided_slice %14 {offsets = [0, 256], sizes = [128, 128], strides = [1, 1]} : vector<128x512xf32> to vector<128x128xf32>
      %30 = vector.broadcast %15 : vector<1x128xf32> to vector<128x128xf32>
      %31 = arith.mulf %29, %30 : vector<128x128xf32>
      %32 = vector.broadcast %16 : vector<1x128xf32> to vector<128x128xf32>
      %33 = arith.addf %31, %32 : vector<128x128xf32>
      %c0_13 = arith.constant 0 : index
      %c256 = arith.constant 256 : index
      %34 = vector.load %arg6[%c0_13, %c256] : memref<128x512xf32, #tpu.memory_space<vmem>>, vector<128x128xf32>
      tpu.vector_store %arg6[%c0_13, %c256], %33 {strides = array<i32>} : memref<128x512xf32, #tpu.memory_space<vmem>>, vector<128x128xf32>,
      %35 = vector.extract_strided_slice %14 {offsets = [0, 384], sizes = [128, 128], strides = [1, 1]} : vector<128x512xf32> to vector<128x128xf32>
      %36 = vector.broadcast %15 : vector<1x128xf32> to vector<128x128xf32>
      %37 = arith.mulf %35, %36 : vector<128x128xf32>
      %38 = vector.broadcast %16 : vector<1x128xf32> to vector<128x128xf32>
      %39 = arith.addf %37, %38 : vector<128x128xf32>
      %c0_14 = arith.constant 0 : index
      %c384 = arith.constant 384 : index
      %40 = vector.load %arg6[%c0_14, %c384] : memref<128x512xf32, #tpu.memory_space<vmem>>, vector<128x128xf32>
      tpu.vector_store %arg6[%c0_14, %c384], %39 {strides = array<i32>} : memref<128x512xf32, #tpu.memory_space<vmem>>, vector<128x128xf32>,
    } else {
    }
    return
  }
  func.func @transform_0(%arg0: i32, %arg1: i32) -> (i32, i32) {
    %c0_i32 = arith.constant 0 : i32
    %0 = arith.cmpi eq, %arg0, %c0_i32 : i32
    %c0_i32_0 = arith.constant 0 : i32
    %1 = arith.select %0, %arg1, %c0_i32_0 : i32
    %c0_i32_1 = arith.constant 0 : i32
    %c0_i32_2 = arith.constant 0 : i32
    return %1, %c0_i32_1 : i32, i32
  }
  func.func @transform_1(%arg0: i32, %arg1: i32) -> (i32, i32) {
    %c0_i32 = arith.constant 0 : i32
    %c0_i32_0 = arith.constant 0 : i32
    %c0_i32_1 = arith.constant 0 : i32
    return %c0_i32, %c0_i32_0 : i32, i32
  }
  func.func @transform_2(%arg0: i32, %arg1: i32) -> (i32, i32) {
    %c0_i32 = arith.constant 0 : i32
    %c0_i32_0 = arith.constant 0 : i32
    %c0_i32_1 = arith.constant 0 : i32
    return %c0_i32, %c0_i32_0 : i32, i32
  }
  func.func @transform_3(%arg0: i32, %arg1: i32) -> (i32, i32) {
    %c0_i32 = arith.constant 0 : i32
    %c0_i32_0 = arith.constant 0 : i32
    %c0_i32_1 = arith.constant 0 : i32
    return %c0_i32, %c0_i32_0 : i32, i32
  }
  func.func @transform_4(%arg0: i32, %arg1: i32) -> (i32, i32) {
    %c2_i32 = arith.constant 2 : i32
    %0 = arith.cmpi eq, %arg0, %c2_i32 : i32
    %c0_i32 = arith.constant 0 : i32
    %1 = arith.select %0, %arg1, %c0_i32 : i32
    %c0_i32_0 = arith.constant 0 : i32
    %c0_i32_1 = arith.constant 0 : i32
    return %1, %c0_i32_0 : i32, i32
  }
}

</mosaic_0001>

<llo_original>
// kernel: unet_innermost_forward.2
$region0: #{unet_innermost_forward.2}
  #allocation0 [shape = 'u32[]', space=smem, size = 0x4, offset = 0x4, fixed_abs, tag = 'smem constant byte address 0x4 - core index']
  #allocation1 [shape = 'u32[144,128]{1,0:T(1,128)}', space=vmem, size = 0x12000, scoped, tag = 'internal scratch']
  %s0 = inlined_call_operand.vmem [shape: bf16[128,64], index: 0, kind: input, shape index: {}]
  %s1 = inlined_call_operand.vmem [shape: bf16[64,128], index: 1, kind: input, shape index: {}]
  %s2 = inlined_call_operand.vmem [shape: bf16[128,128], index: 2, kind: output, shape index: {}]
  %s3 = sld [smem:[#allocation0]]
  $region41: #{unet_innermost_forward.2} parent=0
    _
  %s5 = ssub.s32 1, %s3
  %s6 = scalar_select 0, %s5, %s3
  loop: start=0, step=1, limit=4
  $region2: #{unet_innermost_forward.2} parent=0 // loop_pre_header
    _
  $region3: #{unet_innermost_forward.2} parent=0 // loop_header
    %s8 = sphi 0, %s12
    %p9 = scmp.ge.s32.totalorder %s8, 4
    %s18 = sphi 0, %s20
    %s21 = sphi 0, %s18
    %s22 = sphi 0, %s21
    %s38 = sphi 0, %s22
    %s42 = sphi 0, %s42
    %s44 = sphi 0, %s42
    %s45 = sphi 0, %s44
    %s59 = sphi 0, %s45
    %s65 = sphi 0, %s67
    %s68 = sphi 0, %s65
    %s69 = sphi 0, %s68
    %s85 = sphi 0, %s69
  $region4: #{unet_innermost_forward.2} parent=0 // loop_header_branch
    %11 = sbr.rel (%p9) target = $region8
  $region5: #{unet_innermost_forward.2} parent=0 // loop_body
    %s13 = ssub.s32 %s8, 1
    %s14 = ssub.s32 %s8, 2
    %s15 = sadd.s32 %s8, 1
    %s16 = ssub.s32 %s8, %s15
    %p17 = scmp.eq.s32.totalorder %s16, 0
    %s19 = sadd.s32 %s18, 1
    %s20 = scalar_select %p17, %s18, %s19
    %p23 = pneg %p17
    %p24 = scmp.eq.s32.totalorder %s8, 1
    %p25 = por %p23, %p24
    %p26 = scmp.ne.s32.totalorder %s18, %s21
    %p27 = scmp.eq.s32.totalorder %s8, 0
    %p28 = por %p26, %p27
    %p29 = scmp.ne.s32.totalorder %s18, %s21
    %p30 = scmp.eq.s32.totalorder %s13, 1
    %p31 = por %p29, %p30
    %p32 = scmp.ne.s32.totalorder %s21, %s22
    %p33 = scmp.eq.s32.totalorder %s13, 0
    %p34 = por %p32, %p33
    %p35 = scmp.ne.s32.totalorder %s21, %s22
    %p36 = scmp.eq.s32.totalorder %s14, 1
    %p37 = por %p35, %p36
    %p39 = scmp.ne.s32.totalorder %s22, %s38
    %p40 = scmp.eq.s32.totalorder %s14, 0
    %p41 = por %p39, %p40
    %s43 = sadd.s32 %s42, 1
    %p46 = scmp.eq.s32.totalorder %s8, 1
    %p47 = scmp.ne.s32.totalorder %s42, %s44
    %p48 = scmp.eq.s32.totalorder %s8, 0
    %p49 = por %p47, %p48
    %p50 = scmp.ne.s32.totalorder %s42, %s44
    %p51 = scmp.eq.s32.totalorder %s13, 1
    %p52 = por %p50, %p51
    %p53 = scmp.ne.s32.totalorder %s44, %s45
    %p54 = scmp.eq.s32.totalorder %s13, 0
    %p55 = por %p53, %p54
    %p56 = scmp.ne.s32.totalorder %s44, %s45
    %p57 = scmp.eq.s32.totalorder %s14, 1
    %p58 = por %p56, %p57
    %p60 = scmp.ne.s32.totalorder %s45, %s59
    %p61 = scmp.eq.s32.totalorder %s14, 0
    %p62 = por %p60, %p61
    %s63 = ssub.s32 %s8, %s15
    %p64 = scmp.eq.s32.totalorder %s63, 0
    %s66 = sadd.s32 %s65, 1
    %s67 = scalar_select %p64, %s65, %s66
    %p70 = pneg %p64
    %p71 = scmp.eq.s32.totalorder %s8, 1
    %p72 = por %p70, %p71
    %p73 = scmp.ne.s32.totalorder %s65, %s68
    %p74 = scmp.eq.s32.totalorder %s8, 0
    %p75 = por %p73, %p74
    %p76 = scmp.ne.s32.totalorder %s65, %s68
    %p77 = scmp.eq.s32.totalorder %s13, 1
    %p78 = por %p76, %p77
    %p79 = scmp.ne.s32.totalorder %s68, %s69
    %p80 = scmp.eq.s32.totalorder %s13, 0
    %p81 = por %p79, %p80
    %p82 = scmp.ne.s32.totalorder %s68, %s69
    %p83 = scmp.eq.s32.totalorder %s14, 1
    %p84 = por %p82, %p83
    %p86 = scmp.ne.s32.totalorder %s69, %s85
    %p87 = scmp.eq.s32.totalorder %s14, 0
    %p88 = por %p86, %p87
    %p89 = scmp.le.s32.totalorder 1, %s8
    %p90 = scmp.lt.s32.totalorder %s8, 3
    %p91 = pnand %p89, %p90
    %p92 = pneg %p91
    // Predicated region
    $region9: #{unet_innermost_forward.2} parent=5 // pred_check
      _
    $region10: #{unet_innermost_forward.2} parent=5 // pred_check_branch
      %94 = sbr.rel (%p91) target = $region12
    $region11: #{unet_innermost_forward.2} parent=5 // pred_region
      %s95 = ssub.s32 %s8, 1
      // Predicated region
      $region13: #{unet_innermost_forward.2} parent=11 // pred_check
        %p96 = pneg %p55
      $region14: #{unet_innermost_forward.2} parent=11 // pred_check_branch
        %98 = sbr.rel (%p96) target = $region16
      $region15: #{unet_innermost_forward.2} parent=11 // pred_region
        _
      $region16: #{unet_innermost_forward.2} parent=11 // pred_fallthru
        _
    $region12: #{unet_innermost_forward.2} parent=5 // pred_fallthru
      _
    %p99 = scmp.lt.s32.totalorder %s8, 2
    // Predicated region
    $region17: #{unet_innermost_forward.2} parent=5 // pred_check
      %p100 = pneg %p99
    $region18: #{unet_innermost_forward.2} parent=5 // pred_check_branch
      %102 = sbr.rel (%p100) target = $region20
    $region19: #{unet_innermost_forward.2} parent=5 // pred_region
      // Predicated region
      $region21: #{unet_innermost_forward.2} parent=19 // pred_check
        %p103 = pneg %p28
      $region22: #{unet_innermost_forward.2} parent=19 // pred_check_branch
        %105 = sbr.rel (%p103) target = $region24
      $region23: #{unet_innermost_forward.2} parent=19 // pred_region
        %s106 = smul.u32 8, %s8
        %p107 = scmp.lt.s32.totalorder %s106, 15
        %s108 = scalar_select %p107, %s106, 15
        %s109 = smul.addr %s108, 4
        %s110 = scalar_lea.vmem %s0, %s109
        %s111 = smul.u32 8, %s8
      $region24: #{unet_innermost_forward.2} parent=19 // pred_fallthru
        _
    $region20: #{unet_innermost_forward.2} parent=5 // pred_fallthru
      _
    %p112 = scmp.le.s32.totalorder 1, %s8
    %p113 = scmp.lt.s32.totalorder %s8, 3
    %p114 = pnand %p112, %p113
    %p115 = pneg %p114
    // Predicated region
    $region25: #{unet_innermost_forward.2} parent=5 // pred_check
      _
    $region26: #{unet_innermost_forward.2} parent=5 // pred_check_branch
      %117 = sbr.rel (%p114) target = $region28
    $region27: #{unet_innermost_forward.2} parent=5 // pred_region
      %s118 = ssub.s32 %s8, 1
      %s119 = smul.u32 8, %s13
      %p120 = scmp.lt.s32.totalorder %s119, 15
      %s121 = scalar_select %p120, %s119, 15
      %s122 = smul.addr %s121, 4
      %s123 = scalar_lea.vmem %s0, %s122
      %p124 = pneg %p34
      %p125 = pneg %p31
      %p126 = pneg %p55
      %p127 = pneg %p52
      %p128 = pneg %p81
      %p129 = pneg %p78
      %s130 = smul.u32 8, %s13
      %p131 = scmp.lt.s32.totalorder %s130, 15
      %s132 = scalar_select %p131, %s130, 15
      %s133 = smul.addr %s132, 4
      %s134 = scalar_lea.vmem %s2, %s133
      %s135 = smul.u32 8, %s13
      %p136 = scmp.lt.s32.totalorder %s135, 15
      %s137 = scalar_select %p136, %s135, 15
      %s138 = smul.addr %s137, 4
      %s139 = scalar_lea.vmem %s0, %s138
      %s140 = smul.u32 8, %s13
      %s141 = smul.u32 8, %s13
      %p142 = scmp.lt.s32.totalorder %s141, 15
      %s143 = scalar_select %p142, %s141, 15
      %s144 = smul.addr %s143, 4
      %s145 = scalar_lea.vmem %s2, %s144
      %s146 = smul.u32 8, %s13
      %v148 = vld [vmem:[%s139] sm:$0xf]
      %v149 = vld [vmem:[%s139 + $0x4] sm:$0xf]
      %v150 = vld [vmem:[%s139 + $0x8] sm:$0xf]
      %v151 = vld [vmem:[%s139 + $0xc] sm:$0xf]
      %v152 = vld [vmem:[%s139 + $0x10] sm:$0xf]
      %v153 = vld [vmem:[%s139 + $0x14] sm:$0xf]
      %v154 = vld [vmem:[%s139 + $0x18] sm:$0xf]
      %v155 = vld [vmem:[%s139 + $0x1c] sm:$0xf]
      %v156 = vld [vmem:[%s1] sm:$0xf]
      %v157 = vld [vmem:[%s1 + $0x4] sm:$0xf]
      %v158 = vld [vmem:[%s1 + $0x8] sm:$0xf]
      %v159 = vld [vmem:[%s1 + $0xc] sm:$0xf]
      %v160 = vld [vmem:[%s1 + $0x10] sm:$0xf]
      %v161 = vld [vmem:[%s1 + $0x14] sm:$0xf]
      %v162 = vld [vmem:[%s1 + $0x18] sm:$0xf]
      %v163 = vld [vmem:[%s1 + $0x1c] sm:$0xf]
      %v172 = vunpack.c.l.b16 %v148
      %v173 = vunpack.c.l.b16 %v149
      %v174 = vunpack.c.l.b16 %v150
      %v175 = vunpack.c.l.b16 %v151
      %v176 = vunpack.c.l.b16 %v152
      %v177 = vunpack.c.l.b16 %v153
      %v178 = vunpack.c.l.b16 %v154
      %v179 = vunpack.c.l.b16 %v155
      %v180 = vpack.c.b16 %v173, %v172
      %v181 = vpack.c.b16 %v175, %v174
      %v182 = vpack.c.b16 %v177, %v176
      %v183 = vpack.c.b16 %v179, %v178
      %v192 = vunpack.c.l.b16 %v156
      %v193 = vunpack.c.l.b16 %v157
      %v194 = vunpack.c.l.b16 %v158
      %v195 = vunpack.c.l.b16 %v159
      %v196 = vunpack.c.l.b16 %v160
      %v197 = vunpack.c.l.b16 %v161
      %v198 = vunpack.c.l.b16 %v162
      %v199 = vunpack.c.l.b16 %v163
      %v200 = vpack.c.b16 %v193, %v192
      %v201 = vpack.c.b16 %v195, %v194
      %v202 = vpack.c.b16 %v197, %v196
      %v203 = vpack.c.b16 %v199, %v198
      %vm208 = vcmask 523264
      %v210 = vsel %vm208, %v180, 0
      %v213 = vsel %vm208, %v181, 0
      %v216 = vsel %vm208, %v182, 0
      %v219 = vsel %vm208, %v183, 0
      %221 = vmatprep.subr.bf16.mxu0 0
      %222 = vmatpush1.bf16.msra.mxu0 0
      %223 = vmatprep.subr.bf16.mxu0 0
      %224 = vmatpush1.bf16.msra.mxu0 0
      %225 = vmatprep.subr.bf16.mxu0 0
      %226 = vmatpush1.bf16.msra.mxu0 0
      %227 = vmatprep.subr.bf16.mxu0 0
      %228 = vmatpush1.bf16.msra.mxu0 0
      %229 = vmatprep.subr.bf16.mxu0 0
      %230 = vmatpush1.bf16.msra.mxu0 %v203
      %231 = vmatprep.subr.bf16.mxu0 0
      %232 = vmatpush1.bf16.msra.mxu0 %v202
      %233 = vmatprep.subr.bf16.mxu0 0
      %234 = vmatpush1.bf16.msra.mxu0 %v201
      %235 = vmatprep.subr.bf16.mxu0 0
      %236 = vmatpush1.bf16.msra.mxu0 %v200
      %237 = vmatprep.subr.bf16.mxu0 0
      %238 = vmatpush2.bf16.msra.mxu0 0
      %239 = vmatprep.subr.bf16.mxu0 0
      %240 = vmatpush2.bf16.msra.mxu0 0
      %241 = vmatprep.subr.bf16.mxu0 0
      %242 = vmatpush2.bf16.msra.mxu0 0
      %243 = vmatprep.subr.bf16.mxu0 0
      %244 = vmatpush2.bf16.msra.mxu0 0
      %245 = vmatprep.subr.bf16.mxu0 0
      %246 = vmatpush2.bf16.msra.mxu0 0
      %247 = vmatprep.subr.bf16.mxu0 0
      %248 = vmatpush2.bf16.msra.mxu0 0
      %249 = vmatprep.subr.bf16.mxu0 0
      %250 = vmatpush2.bf16.msra.mxu0 0
      %251 = vmatprep.subr.bf16.mxu0 0
      %252 = vmatpush2.bf16.msra.mxu0 0
      %253 = vmatprep.mubr.bf16.mxu0 0
      %254 = vmatmul.mubr.bf16.gmra.mxu0 %v210
      %v255 = vpop.f32.mrf.mxu0
      %v256 = vadd.f32 0.0, %v255
      %v257 = vpop.f32.mrf.mxu0
      %v258 = vpop.f32.mrf.mxu0
      %v259 = vadd.f32 0.0, %v258
      %v260 = vpop.f32.mrf.mxu0
      %261 = vmatprep.mubr.bf16.mxu0 0
      %262 = vmatmul.mubr.bf16.gmra.mxu0 %v213
      %v263 = vpop.f32.mrf.mxu0
      %v264 = vadd.f32 0.0, %v263
      %v265 = vpop.f32.mrf.mxu0
      %v266 = vpop.f32.mrf.mxu0
      %v267 = vadd.f32 0.0, %v266
      %v268 = vpop.f32.mrf.mxu0
      %269 = vmatprep.mubr.bf16.mxu0 0
      %270 = vmatmul.mubr.bf16.gmra.mxu0 %v216
      %v271 = vpop.f32.mrf.mxu0
      %v272 = vadd.f32 0.0, %v271
      %v273 = vpop.f32.mrf.mxu0
      %v274 = vpop.f32.mrf.mxu0
      %v275 = vadd.f32 0.0, %v274
      %v276 = vpop.f32.mrf.mxu0
      %277 = vmatprep.mubr.bf16.mxu0 0
      %278 = vmatmul.mubr.bf16.gmra.mxu0 %v219
      %v279 = vpop.f32.mrf.mxu0
      %v280 = vadd.f32 0.0, %v279
      %v281 = vpop.f32.mrf.mxu0
      %v282 = vpop.f32.mrf.mxu0
      %v283 = vadd.f32 0.0, %v282
      %v284 = vpop.f32.mrf.mxu0
      %285 = vdwg.mxu0
      %v286 = vpack.c.bf16 %v259, %v256
      %v287 = vpack.c.bf16 %v267, %v264
      %v288 = vpack.c.bf16 %v275, %v272
      %v289 = vpack.c.bf16 %v283, %v280
      %v294 = vunpack.c.l.b16 %v286
      %v295 = vunpack.c.h.b16 %v286
      %v296 = vunpack.c.l.b16 %v287
      %v297 = vunpack.c.h.b16 %v287
      %v298 = vunpack.c.l.b16 %v288
      %v299 = vunpack.c.h.b16 %v288
      %v300 = vunpack.c.l.b16 %v289
      %v301 = vunpack.c.h.b16 %v289
      %v302 = vpack.c.b16 %v294, %v294
      %v303 = vpack.c.b16 %v295, %v295
      %v304 = vpack.c.b16 %v296, %v296
      %v305 = vpack.c.b16 %v297, %v297
      %v306 = vpack.c.b16 %v298, %v298
      %v307 = vpack.c.b16 %v299, %v299
      %v308 = vpack.c.b16 %v300, %v300
      %v309 = vpack.c.b16 %v301, %v301
      %318 = vst [vmem:[%s145] sm:$0xf] %v302
      %319 = vst [vmem:[%s145 + $0x4] sm:$0xf] %v303
      %320 = vst [vmem:[%s145 + $0x8] sm:$0xf] %v304
      %321 = vst [vmem:[%s145 + $0xc] sm:$0xf] %v305
      %322 = vst [vmem:[%s145 + $0x10] sm:$0xf] %v306
      %323 = vst [vmem:[%s145 + $0x14] sm:$0xf] %v307
      %324 = vst [vmem:[%s145 + $0x18] sm:$0xf] %v308
      %325 = vst [vmem:[%s145 + $0x1c] sm:$0xf] %v309
      %s326 = smul.u32 8, %s13
      %p327 = scmp.lt.s32.totalorder %s326, 15
      %s328 = scalar_select %p327, %s326, 15
      %s329 = smul.addr %s328, 4
      %s330 = scalar_lea.vmem %s2, %s329
      // Predicated region
      $region29: #{unet_innermost_forward.2} parent=27 // pred_check
        %p331 = pneg %p78
      $region30: #{unet_innermost_forward.2} parent=27 // pred_check_branch
        %333 = sbr.rel (%p331) target = $region32
      $region31: #{unet_innermost_forward.2} parent=27 // pred_region
        %s334 = smul.u32 8, %s13
      $region32: #{unet_innermost_forward.2} parent=27 // pred_fallthru
        _
    $region28: #{unet_innermost_forward.2} parent=5 // pred_fallthru
      _
    %p335 = scmp.le.s32.totalorder 2, %s8
    // Predicated region
    $region33: #{unet_innermost_forward.2} parent=5 // pred_check
      %p336 = pneg %p335
    $region34: #{unet_innermost_forward.2} parent=5 // pred_check_branch
      %338 = sbr.rel (%p336) target = $region36
    $region35: #{unet_innermost_forward.2} parent=5 // pred_region
      %s339 = ssub.s32 %s8, 2
      // Predicated region
      $region37: #{unet_innermost_forward.2} parent=35 // pred_check
        %p340 = pneg %p84
      $region38: #{unet_innermost_forward.2} parent=35 // pred_check_branch
        %342 = sbr.rel (%p340) target = $region40
      $region39: #{unet_innermost_forward.2} parent=35 // pred_region
        %s343 = smul.u32 8, %s14
        %p344 = scmp.lt.s32.totalorder %s343, 15
        %s345 = scalar_select %p344, %s343, 15
        %s346 = smul.addr %s345, 4
        %s347 = scalar_lea.vmem %s2, %s346
      $region40: #{unet_innermost_forward.2} parent=35 // pred_fallthru
        _
    $region36: #{unet_innermost_forward.2} parent=5 // pred_fallthru
      _
  $region6: #{unet_innermost_forward.2} parent=0 // loop_footer
    %s12 = sadd.s32 1, %s8
  $region7: #{unet_innermost_forward.2} parent=0 // loop_footer_branch
    %7 = sbr.rel target = $region3
  $region8: #{unet_innermost_forward.2} parent=0 // loop_exit
    _

// kernel: unet_innermost_forward.3
$region0: #{unet_innermost_forward.3}
  #allocation0 [shape = 'u32[]', space=smem, size = 0x4, offset = 0x4, fixed_abs, tag = 'smem constant byte address 0x4 - core index']
  #allocation1 [shape = 'u32[144,128]{1,0:T(1,128)}', space=vmem, size = 0x12000, scoped, tag = 'internal scratch']
  #allocation2 [shape = 'f32[1,128,512]{2,1,0:T(8,128)}', space=vmem, size = 0x40000, scoped, tag = 'scratch operand']
  #allocation3 [shape = 'f32[1,128]{1,0:T(1,128)}', space=vmem, size = 0x200, scoped, tag = 'scratch operand']
  #allocation4 [shape = 'f32[1,128]{1,0:T(1,128)}', space=vmem, size = 0x200, scoped, tag = 'scratch operand']
  #allocation5 [shape = 'f32[1,128]{1,0:T(1,128)}', space=vmem, size = 0x200, scoped, tag = 'scratch operand']
  #allocation6 [shape = 'f32[1,128]{1,0:T(1,128)}', space=vmem, size = 0x200, scoped, tag = 'scratch operand']
  #allocation7 [shape = 'f32[1,128]{1,0:T(1,128)}', space=vmem, size = 0x200, scoped, tag = 'scratch operand']
  %s0 = inlined_call_operand.vmem [shape: bf16[128,144], index: 0, kind: input, shape index: {}]
  %s1 = inlined_call_operand.vmem [shape: bf16[144,512], index: 1, kind: input, shape index: {}]
  %s2 = inlined_call_operand.vmem [shape: f32[1,128], index: 2, kind: input, shape index: {}]
  %s3 = inlined_call_operand.vmem [shape: f32[1,128], index: 3, kind: input, shape index: {}]
  %s4 = inlined_call_operand.vmem [shape: f32[128,512], index: 4, kind: output, shape index: {}]
  %s5 = sld [smem:[#allocation0]]
  $region73: #{unet_innermost_forward.3} parent=0
    _
  %s7 = ssub.s32 1, %s5
  %s8 = scalar_select 0, %s7, %s5
  loop: start=0, step=1, limit=5
  $region2: #{unet_innermost_forward.3} parent=0 // loop_pre_header
    _
  $region3: #{unet_innermost_forward.3} parent=0 // loop_header
    %s10 = sphi 0, %s14
    %p11 = scmp.ge.s32.totalorder %s10, 5
    %s17 = sphi 0, %s29
    %s18 = sphi 0, %s25
    %s19 = sphi 0, %s17
    %s20 = sphi 0, %s18
    %s21 = sphi 0, %s19
    %s22 = sphi 0, %s20
    %s36 = sphi 0, %s38
    %s39 = sphi 0, %s36
    %s40 = sphi 0, %s39
    %s56 = sphi 0, %s40
    %s60 = sphi 0, %s60
    %s62 = sphi 0, %s60
    %s63 = sphi 0, %s62
    %s77 = sphi 0, %s63
    %s81 = sphi 0, %s81
    %s83 = sphi 0, %s81
    %s84 = sphi 0, %s83
    %s98 = sphi 0, %s84
    %s102 = sphi 0, %s102
    %s104 = sphi 0, %s102
    %s105 = sphi 0, %s104
    %s119 = sphi 0, %s105
    %s129 = sphi 0, %s131
    %s132 = sphi 0, %s129
    %s133 = sphi 0, %s132
    %s149 = sphi 0, %s133
  $region4: #{unet_innermost_forward.3} parent=0 // loop_header_branch
    %13 = sbr.rel (%p11) target = $region8
  $region5: #{unet_innermost_forward.3} parent=0 // loop_body
    %s15 = ssub.s32 %s10, 1
    %s16 = ssub.s32 %s10, 2
    %s23 = sadd.s32 1, %s18
    %p24 = scmp.ge.s32.totalorder %s23, 1
    %s25 = scalar_select %p24, 0, %s23
    %s26 = sadd.s32 1, %s17
    %s27 = scalar_select %p24, %s26, %s17
    %p28 = scmp.ge.s32.totalorder %s27, 3
    %s29 = scalar_select %p28, 0, %s27
    %p30 = scmp.eq.s32.totalorder %s17, 0
    %s31 = scalar_select %p30, %s18, 0
    %p32 = scmp.eq.s32.totalorder %s29, 0
    %s33 = scalar_select %p32, %s25, 0
    %s34 = ssub.s32 %s31, %s33
    %p35 = scmp.eq.s32.totalorder %s34, 0
    %s37 = sadd.s32 %s36, 1
    %s38 = scalar_select %p35, %s36, %s37
    %p41 = pneg %p35
    %p42 = scmp.eq.s32.totalorder %s10, 2
    %p43 = por %p41, %p42
    %p44 = scmp.ne.s32.totalorder %s36, %s39
    %p45 = scmp.eq.s32.totalorder %s10, 0
    %p46 = por %p44, %p45
    %p47 = scmp.ne.s32.totalorder %s36, %s39
    %p48 = scmp.eq.s32.totalorder %s15, 2
    %p49 = por %p47, %p48
    %p50 = scmp.ne.s32.totalorder %s39, %s40
    %p51 = scmp.eq.s32.totalorder %s15, 0
    %p52 = por %p50, %p51
    %p53 = scmp.ne.s32.totalorder %s39, %s40
    %p54 = scmp.eq.s32.totalorder %s16, 2
    %p55 = por %p53, %p54
    %p57 = scmp.ne.s32.totalorder %s40, %s56
    %p58 = scmp.eq.s32.totalorder %s16, 0
    %p59 = por %p57, %p58
    %s61 = sadd.s32 %s60, 1
    %p64 = scmp.eq.s32.totalorder %s10, 2
    %p65 = scmp.ne.s32.totalorder %s60, %s62
    %p66 = scmp.eq.s32.totalorder %s10, 0
    %p67 = por %p65, %p66
    %p68 = scmp.ne.s32.totalorder %s60, %s62
    %p69 = scmp.eq.s32.totalorder %s15, 2
    %p70 = por %p68, %p69
    %p71 = scmp.ne.s32.totalorder %s62, %s63
    %p72 = scmp.eq.s32.totalorder %s15, 0
    %p73 = por %p71, %p72
    %p74 = scmp.ne.s32.totalorder %s62, %s63
    %p75 = scmp.eq.s32.totalorder %s16, 2
    %p76 = por %p74, %p75
    %p78 = scmp.ne.s32.totalorder %s63, %s77
    %p79 = scmp.eq.s32.totalorder %s16, 0
    %p80 = por %p78, %p79
    %s82 = sadd.s32 %s81, 1
    %p85 = scmp.eq.s32.totalorder %s10, 2
    %p86 = scmp.ne.s32.totalorder %s81, %s83
    %p87 = scmp.eq.s32.totalorder %s10, 0
    %p88 = por %p86, %p87
    %p89 = scmp.ne.s32.totalorder %s81, %s83
    %p90 = scmp.eq.s32.totalorder %s15, 2
    %p91 = por %p89, %p90
    %p92 = scmp.ne.s32.totalorder %s83, %s84
    %p93 = scmp.eq.s32.totalorder %s15, 0
    %p94 = por %p92, %p93
    %p95 = scmp.ne.s32.totalorder %s83, %s84
    %p96 = scmp.eq.s32.totalorder %s16, 2
    %p97 = por %p95, %p96
    %p99 = scmp.ne.s32.totalorder %s84, %s98
    %p100 = scmp.eq.s32.totalorder %s16, 0
    %p101 = por %p99, %p100
    %s103 = sadd.s32 %s102, 1
    %p106 = scmp.eq.s32.totalorder %s10, 2
    %p107 = scmp.ne.s32.totalorder %s102, %s104
    %p108 = scmp.eq.s32.totalorder %s10, 0
    %p109 = por %p107, %p108
    %p110 = scmp.ne.s32.totalorder %s102, %s104
    %p111 = scmp.eq.s32.totalorder %s15, 2
    %p112 = por %p110, %p111
    %p113 = scmp.ne.s32.totalorder %s104, %s105
    %p114 = scmp.eq.s32.totalorder %s15, 0
    %p115 = por %p113, %p114
    %p116 = scmp.ne.s32.totalorder %s104, %s105
    %p117 = scmp.eq.s32.totalorder %s16, 2
    %p118 = por %p116, %p117
    %p120 = scmp.ne.s32.totalorder %s105, %s119
    %p121 = scmp.eq.s32.totalorder %s16, 0
    %p122 = por %p120, %p121
    %p123 = scmp.eq.s32.totalorder %s17, 2
    %s124 = scalar_select %p123, %s18, 0
    %p125 = scmp.eq.s32.totalorder %s29, 2
    %s126 = scalar_select %p125, %s25, 0
    %s127 = ssub.s32 %s124, %s126
    %p128 = scmp.eq.s32.totalorder %s127, 0
    %s130 = sadd.s32 %s129, 1
    %s131 = scalar_select %p128, %s129, %s130
    %p134 = pneg %p128
    %p135 = scmp.eq.s32.totalorder %s10, 2
    %p136 = por %p134, %p135
    %p137 = scmp.ne.s32.totalorder %s129, %s132
    %p138 = scmp.eq.s32.totalorder %s10, 0
    %p139 = por %p137, %p138
    %p140 = scmp.ne.s32.totalorder %s129, %s132
    %p141 = scmp.eq.s32.totalorder %s15, 2
    %p142 = por %p140, %p141
    %p143 = scmp.ne.s32.totalorder %s132, %s133
    %p144 = scmp.eq.s32.totalorder %s15, 0
    %p145 = por %p143, %p144
    %p146 = scmp.ne.s32.totalorder %s132, %s133
    %p147 = scmp.eq.s32.totalorder %s16, 2
    %p148 = por %p146, %p147
    %p150 = scmp.ne.s32.totalorder %s133, %s149
    %p151 = scmp.eq.s32.totalorder %s16, 0
    %p152 = por %p150, %p151
    %p153 = scmp.le.s32.totalorder 1, %s10
    %p154 = scmp.lt.s32.totalorder %s10, 4
    %p155 = pnand %p153, %p154
    %p156 = pneg %p155
    // Predicated region
    $region9: #{unet_innermost_forward.3} parent=5 // pred_check
      _
    $region10: #{unet_innermost_forward.3} parent=5 // pred_check_branch
      %158 = sbr.rel (%p155) target = $region12
    $region11: #{unet_innermost_forward.3} parent=5 // pred_region
      %s159 = ssub.s32 %s10, 1
      // Predicated region
      $region13: #{unet_innermost_forward.3} parent=11 // pred_check
        %p160 = pneg %p73
      $region14: #{unet_innermost_forward.3} parent=11 // pred_check_branch
        %162 = sbr.rel (%p160) target = $region16
      $region15: #{unet_innermost_forward.3} parent=11 // pred_region
        _
      $region16: #{unet_innermost_forward.3} parent=11 // pred_fallthru
        _
      // Predicated region
      $region17: #{unet_innermost_forward.3} parent=11 // pred_check
        %p163 = pneg %p94
      $region18: #{unet_innermost_forward.3} parent=11 // pred_check_branch
        %165 = sbr.rel (%p163) target = $region20
      $region19: #{unet_innermost_forward.3} parent=11 // pred_region
        _
      $region20: #{unet_innermost_forward.3} parent=11 // pred_fallthru
        _
      // Predicated region
      $region21: #{unet_innermost_forward.3} parent=11 // pred_check
        %p166 = pneg %p115
      $region22: #{unet_innermost_forward.3} parent=11 // pred_check_branch
        %168 = sbr.rel (%p166) target = $region24
      $region23: #{unet_innermost_forward.3} parent=11 // pred_region
        _
      $region24: #{unet_innermost_forward.3} parent=11 // pred_fallthru
        _
    $region12: #{unet_innermost_forward.3} parent=5 // pred_fallthru
      _
    %p169 = scmp.lt.s32.totalorder %s10, 3
    // Predicated region
    $region25: #{unet_innermost_forward.3} parent=5 // pred_check
      %p170 = pneg %p169
    $region26: #{unet_innermost_forward.3} parent=5 // pred_check_branch
      %172 = sbr.rel (%p170) target = $region28
    $region27: #{unet_innermost_forward.3} parent=5 // pred_region
      // Predicated region
      $region29: #{unet_innermost_forward.3} parent=27 // pred_check
        %p173 = pneg %p46
      $region30: #{unet_innermost_forward.3} parent=27 // pred_check_branch
        %175 = sbr.rel (%p173) target = $region32
      $region31: #{unet_innermost_forward.3} parent=27 // pred_region
        %p176 = scmp.eq.s32.totalorder %s17, 0
        %s177 = scalar_select %p176, %s18, 0
        %s178 = smul.u32 16, %s177
        %p179 = scmp.lt.s32.totalorder %s178, 15
        %s180 = scalar_select %p179, %s178, 15
        %s181 = smul.addr %s180, 2
        %s182 = smul.addr %s181, 4
        %s183 = scalar_lea.vmem %s0, %s182
        %p184 = scmp.eq.s32.totalorder %s17, 0
        %s185 = scalar_select %p184, %s18, 0
        %s186 = smul.u32 16, %s185
      $region32: #{unet_innermost_forward.3} parent=27 // pred_fallthru
        _
    $region28: #{unet_innermost_forward.3} parent=5 // pred_fallthru
      _
    %p187 = scmp.le.s32.totalorder 1, %s10
    %p188 = scmp.lt.s32.totalorder %s10, 4
    %p189 = pnand %p187, %p188
    %p190 = pneg %p189
    // Predicated region
    $region33: #{unet_innermost_forward.3} parent=5 // pred_check
      _
    $region34: #{unet_innermost_forward.3} parent=5 // pred_check_branch
      %192 = sbr.rel (%p189) target = $region36
    $region35: #{unet_innermost_forward.3} parent=5 // pred_region
      %s193 = ssub.s32 %s10, 1
      %p194 = scmp.eq.s32.totalorder %s19, 0
      %s195 = scalar_select %p194, %s20, 0
      %s196 = smul.u32 16, %s195
      %p197 = scmp.lt.s32.totalorder %s196, 15
      %s198 = scalar_select %p197, %s196, 15
      %s199 = smul.addr %s198, 2
      %s200 = smul.addr %s199, 4
      %s201 = scalar_lea.vmem %s0, %s200
      %p202 = pneg %p52
      %p203 = pneg %p49
      %p204 = pneg %p73
      %p205 = pneg %p70
      %p206 = pneg %p94
      %p207 = pneg %p91
      %p208 = pneg %p115
      %p209 = pneg %p112
      %p210 = pneg %p145
      %p211 = pneg %p142
      %p212 = scmp.eq.s32.totalorder %s19, 2
      %s213 = scalar_select %p212, %s20, 0
      %s214 = smul.u32 16, %s213
      %p215 = scmp.lt.s32.totalorder %s214, 15
      %s216 = scalar_select %p215, %s214, 15
      %s217 = smul.addr %s216, 4
      %s218 = smul.addr %s217, 8
      %s219 = scalar_lea.vmem %s4, %s218
      %p220 = scmp.eq.s32.totalorder %s19, 0
      %s221 = scalar_select %p220, %s20, 0
      %s222 = smul.u32 16, %s221
      %p223 = scmp.lt.s32.totalorder %s222, 15
      %s224 = scalar_select %p223, %s222, 15
      %s225 = smul.addr %s224, 2
      %s226 = smul.addr %s225, 4
      %s227 = scalar_lea.vmem %s0, %s226
      %p228 = scmp.eq.s32.totalorder %s19, 0
      %s229 = scalar_select %p228, %s20, 0
      %s230 = smul.u32 16, %s229
      %p231 = scmp.eq.s32.totalorder %s19, 2
      %s232 = scalar_select %p231, %s20, 0
      %s233 = smul.u32 16, %s232
      %p234 = scmp.lt.s32.totalorder %s233, 15
      %s235 = scalar_select %p234, %s233, 15
      %s236 = smul.addr %s235, 4
      %s237 = smul.addr %s236, 8
      %s238 = scalar_lea.vmem %s4, %s237
      %p239 = scmp.eq.s32.totalorder %s19, 2
      %s240 = scalar_select %p239, %s20, 0
      %s241 = smul.u32 16, %s240
      %p243 = scmp.eq.s32.totalorder %s19, 0
      // Predicated region
      $region37: #{unet_innermost_forward.3} parent=35 // pred_check
        %p244 = pneg %p243
      $region38: #{unet_innermost_forward.3} parent=35 // pred_check_branch
        %246 = sbr.rel (%p244) target = $region40
      $region39: #{unet_innermost_forward.3} parent=35 // pred_region
        %p247 = scmp.eq.s32.totalorder %s20, 0
        // Predicated region
        $region41: #{unet_innermost_forward.3} parent=39 // pred_check
          %p248 = pneg %p247
        $region42: #{unet_innermost_forward.3} parent=39 // pred_check_branch
          %250 = sbr.rel (%p248) target = $region44
        $region43: #{unet_innermost_forward.3} parent=39 // pred_region
          %251 = vst [vmem:[#allocation3] sm:$0x1] 0.0
          %252 = vst [vmem:[#allocation4] sm:$0x1] 0.0
        $region44: #{unet_innermost_forward.3} parent=39 // pred_fallthru
          _
        %v253 = vld [vmem:[%s227] sm:$0xff]
        %v254 = vld [vmem:[%s227 + $0x8] sm:$0xff]
        %v255 = vld [vmem:[%s227 + $0x10] sm:$0xff]
        %v256 = vld [vmem:[%s227 + $0x18] sm:$0xff]
        %v257 = vld [vmem:[%s227 + $0x20] sm:$0xff]
        %v258 = vld [vmem:[%s227 + $0x28] sm:$0xff]
        %v259 = vld [vmem:[%s227 + $0x30] sm:$0xff]
        %v260 = vld [vmem:[%s227 + $0x38] sm:$0xff]
        %v261 = vld [vmem:[%s227 + $0x40] sm:$0xff]
        %v262 = vld [vmem:[%s227 + $0x48] sm:$0xff]
        %v263 = vld [vmem:[%s227 + $0x50] sm:$0xff]
        %v264 = vld [vmem:[%s227 + $0x58] sm:$0xff]
        %v265 = vld [vmem:[%s227 + $0x60] sm:$0xff]
        %v266 = vld [vmem:[%s227 + $0x68] sm:$0xff]
        %v267 = vld [vmem:[%s227 + $0x70] sm:$0xff]
        %v268 = vld [vmem:[%s227 + $0x78] sm:$0xff]
        %v269 = vld [vmem:[%s1] sm:$0xff]
        %v270 = vld [vmem:[%s1 + $0x8] sm:$0xff]
        %v271 = vld [vmem:[%s1 + $0x10] sm:$0xff]
        %v272 = vld [vmem:[%s1 + $0x18] sm:$0xff]
        %v273 = vld [vmem:[%s1 + $0x20] sm:$0xff]
        %v274 = vld [vmem:[%s1 + $0x28] sm:$0xff]
        %v275 = vld [vmem:[%s1 + $0x30] sm:$0xff]
        %v276 = vld [vmem:[%s1 + $0x38] sm:$0xff]
        %v277 = vld [vmem:[%s1 + $0x40] sm:$0xff]
        %v278 = vld [vmem:[%s1 + $0x48] sm:$0xff]
        %v279 = vld [vmem:[%s1 + $0x50] sm:$0xff]
        %v280 = vld [vmem:[%s1 + $0x58] sm:$0xff]
        %v281 = vld [vmem:[%s1 + $0x60] sm:$0xff]
        %v282 = vld [vmem:[%s1 + $0x68] sm:$0xff]
        %v283 = vld [vmem:[%s1 + $0x70] sm:$0xff]
        %v284 = vld [vmem:[%s1 + $0x78] sm:$0xff]
        %v285 = vld [vmem:[%s1 + $0x80] sm:$0xff]
        %v286 = vld [vmem:[%s1 + $0x88] sm:$0xff]
        %v287 = vld [vmem:[%s1 + $0x90] sm:$0xff]
        %v288 = vld [vmem:[%s1 + $0x98] sm:$0xff]
        %v289 = vld [vmem:[%s1 + $0xa0] sm:$0xff]
        %v290 = vld [vmem:[%s1 + $0xa8] sm:$0xff]
        %v291 = vld [vmem:[%s1 + $0xb0] sm:$0xff]
        %v292 = vld [vmem:[%s1 + $0xb8] sm:$0xff]
        %v293 = vld [vmem:[%s1 + $0xc0] sm:$0xff]
        %v294 = vld [vmem:[%s1 + $0xc8] sm:$0xff]
        %v295 = vld [vmem:[%s1 + $0xd0] sm:$0xff]
        %v296 = vld [vmem:[%s1 + $0xd8] sm:$0xff]
        %v297 = vld [vmem:[%s1 + $0xe0] sm:$0xff]
        %v298 = vld [vmem:[%s1 + $0xe8] sm:$0xff]
        %v299 = vld [vmem:[%s1 + $0xf0] sm:$0xff]
        %v300 = vld [vmem:[%s1 + $0xf8] sm:$0xff]
        %v301 = vld [vmem:[%s1 + $0x100] sm:$0xff]
        %v302 = vld [vmem:[%s1 + $0x108] sm:$0xff]
        %v303 = vld [vmem:[%s1 + $0x110] sm:$0xff]
        %v304 = vld [vmem:[%s1 + $0x118] sm:$0xff]
        %v321 = vunpack.c.l.b16 %v253
        %v322 = vunpack.c.h.b16 %v253
        %v323 = vunpack.c.l.b16 %v254
        %v324 = vunpack.c.h.b16 %v254
        %v325 = vunpack.c.l.b16 %v255
        %v326 = vunpack.c.h.b16 %v255
        %v327 = vunpack.c.l.b16 %v256
        %v328 = vunpack.c.h.b16 %v256
        %v329 = vunpack.c.l.b16 %v257
        %v330 = vunpack.c.h.b16 %v257
        %v331 = vunpack.c.l.b16 %v258
        %v332 = vunpack.c.h.b16 %v258
        %v333 = vunpack.c.l.b16 %v259
        %v334 = vunpack.c.h.b16 %v259
        %v335 = vunpack.c.l.b16 %v260
        %v336 = vunpack.c.h.b16 %v260
        %v337 = vunpack.c.l.b16 %v261
        %v338 = vunpack.c.h.b16 %v261
        %v339 = vunpack.c.l.b16 %v262
        %v340 = vunpack.c.h.b16 %v262
        %v341 = vunpack.c.l.b16 %v263
        %v342 = vunpack.c.h.b16 %v263
        %v343 = vunpack.c.l.b16 %v264
        %v344 = vunpack.c.h.b16 %v264
        %v345 = vunpack.c.l.b16 %v265
        %v346 = vunpack.c.h.b16 %v265
        %v347 = vunpack.c.l.b16 %v266
        %v348 = vunpack.c.h.b16 %v266
        %v349 = vunpack.c.l.b16 %v267
        %v350 = vunpack.c.h.b16 %v267
        %v351 = vunpack.c.l.b16 %v268
        %v352 = vunpack.c.h.b16 %v268
        %v353 = vpack.c.b16 %v323, %v321
        %v354 = vpack.c.b16 %v324, %v322
        %v355 = vpack.c.b16 %v327, %v325
        %v356 = vpack.c.b16 %v328, %v326
        %v357 = vpack.c.b16 %v331, %v329
        %v358 = vpack.c.b16 %v332, %v330
        %v359 = vpack.c.b16 %v335, %v333
        %v360 = vpack.c.b16 %v336, %v334
        %v361 = vpack.c.b16 %v339, %v337
        %v362 = vpack.c.b16 %v340, %v338
        %v363 = vpack.c.b16 %v343, %v341
        %v364 = vpack.c.b16 %v344, %v342
        %v365 = vpack.c.b16 %v347, %v345
        %v366 = vpack.c.b16 %v348, %v346
        %v367 = vpack.c.b16 %v351, %v349
        %v368 = vpack.c.b16 %v352, %v350
        %v413 = vunpack.c.l.b16 %v269
        %v414 = vunpack.c.h.b16 %v269
        %v415 = vunpack.c.l.b16 %v270
        %v416 = vunpack.c.h.b16 %v270
        %v417 = vunpack.c.l.b16 %v271
        %v418 = vunpack.c.h.b16 %v271
        %v419 = vunpack.c.l.b16 %v272
        %v420 = vunpack.c.h.b16 %v272
        %v421 = vunpack.c.l.b16 %v273
        %v422 = vunpack.c.h.b16 %v273
        %v423 = vunpack.c.l.b16 %v274
        %v424 = vunpack.c.h.b16 %v274
        %v425 = vunpack.c.l.b16 %v275
        %v426 = vunpack.c.h.b16 %v275
        %v427 = vunpack.c.l.b16 %v276
        %v428 = vunpack.c.h.b16 %v276
        %v429 = vunpack.c.l.b16 %v277
        %v430 = vunpack.c.h.b16 %v277
        %v431 = vunpack.c.l.b16 %v278
        %v432 = vunpack.c.h.b16 %v278
        %v433 = vunpack.c.l.b16 %v279
        %v434 = vunpack.c.h.b16 %v279
        %v435 = vunpack.c.l.b16 %v280
        %v436 = vunpack.c.h.b16 %v280
        %v437 = vunpack.c.l.b16 %v281
        %v438 = vunpack.c.h.b16 %v281
        %v439 = vunpack.c.l.b16 %v282
        %v440 = vunpack.c.h.b16 %v282
        %v441 = vunpack.c.l.b16 %v283
        %v442 = vunpack.c.h.b16 %v283
        %v443 = vunpack.c.l.b16 %v284
        %v444 = vunpack.c.h.b16 %v284
        %v445 = vunpack.c.l.b16 %v285
        %v446 = vunpack.c.h.b16 %v285
        %v447 = vunpack.c.l.b16 %v286
        %v448 = vunpack.c.h.b16 %v286
        %v449 = vunpack.c.l.b16 %v287
        %v450 = vunpack.c.h.b16 %v287
        %v451 = vunpack.c.l.b16 %v288
        %v452 = vunpack.c.h.b16 %v288
        %v453 = vunpack.c.l.b16 %v289
        %v454 = vunpack.c.h.b16 %v289
        %v455 = vunpack.c.l.b16 %v290
        %v456 = vunpack.c.h.b16 %v290
        %v457 = vunpack.c.l.b16 %v291
        %v458 = vunpack.c.h.b16 %v291
        %v459 = vunpack.c.l.b16 %v292
        %v460 = vunpack.c.h.b16 %v292
        %v461 = vunpack.c.l.b16 %v293
        %v462 = vunpack.c.h.b16 %v293
        %v463 = vunpack.c.l.b16 %v294
        %v464 = vunpack.c.h.b16 %v294
        %v465 = vunpack.c.l.b16 %v295
        %v466 = vunpack.c.h.b16 %v295
        %v467 = vunpack.c.l.b16 %v296
        %v468 = vunpack.c.h.b16 %v296
        %v469 = vunpack.c.l.b16 %v297
        %v470 = vunpack.c.h.b16 %v297
        %v471 = vunpack.c.l.b16 %v298
        %v472 = vunpack.c.h.b16 %v298
        %v473 = vunpack.c.l.b16 %v299
        %v474 = vunpack.c.h.b16 %v299
        %v475 = vunpack.c.l.b16 %v300
        %v476 = vunpack.c.h.b16 %v300
        %v477 = vunpack.c.l.b16 %v301
        %v478 = vunpack.c.h.b16 %v301
        %v479 = vunpack.c.l.b16 %v302
        %v480 = vunpack.c.h.b16 %v302
        %v481 = vunpack.c.l.b16 %v303
        %v482 = vunpack.c.h.b16 %v303
        %v483 = vunpack.c.l.b16 %v304
        %v484 = vunpack.c.h.b16 %v304
        %v485 = vpack.c.b16 %v417, %v413
        %v486 = vpack.c.b16 %v418, %v414
        %v487 = vpack.c.b16 %v419, %v415
        %v488 = vpack.c.b16 %v420, %v416
        %v489 = vpack.c.b16 %v425, %v421
        %v490 = vpack.c.b16 %v426, %v422
        %v491 = vpack.c.b16 %v427, %v423
        %v492 = vpack.c.b16 %v428, %v424
        %v493 = vpack.c.b16 %v433, %v429
        %v494 = vpack.c.b16 %v434, %v430
        %v495 = vpack.c.b16 %v435, %v431
        %v496 = vpack.c.b16 %v436, %v432
        %v497 = vpack.c.b16 %v441, %v437
        %v498 = vpack.c.b16 %v442, %v438
        %v499 = vpack.c.b16 %v443, %v439
        %v500 = vpack.c.b16 %v444, %v440
        %v501 = vpack.c.b16 %v449, %v445
        %v502 = vpack.c.b16 %v450, %v446
        %v503 = vpack.c.b16 %v451, %v447
        %v504 = vpack.c.b16 %v452, %v448
        %v505 = vpack.c.b16 %v457, %v453
        %v506 = vpack.c.b16 %v458, %v454
        %v507 = vpack.c.b16 %v459, %v455
        %v508 = vpack.c.b16 %v460, %v456
        %v509 = vpack.c.b16 %v465, %v461
        %v510 = vpack.c.b16 %v466, %v462
        %v511 = vpack.c.b16 %v467, %v463
        %v512 = vpack.c.b16 %v468, %v464
        %v513 = vpack.c.b16 %v473, %v469
        %v514 = vpack.c.b16 %v474, %v470
        %v515 = vpack.c.b16 %v475, %v471
        %v516 = vpack.c.b16 %v476, %v472
        %v517 = vpack.c.b16 %v481, %v477
        %v518 = vpack.c.b16 %v482, %v478
        %v519 = vpack.c.b16 %v483, %v479
        %v520 = vpack.c.b16 %v484, %v480
        %vm557 = vcmask 130048
        %v559 = vsel %vm557, %v354, 0
        %v562 = vsel %vm557, %v356, 0
        %v565 = vsel %vm557, %v358, 0
        %v568 = vsel %vm557, %v360, 0
        %v571 = vsel %vm557, %v362, 0
        %v574 = vsel %vm557, %v364, 0
        %v577 = vsel %vm557, %v366, 0
        %v580 = vsel %vm557, %v368, 0
        %582 = vmatprep.subr.bf16.mxu0 %v514
        %583 = vmatpush1.bf16.msra.mxu0 %v513
        %584 = vmatprep.subr.bf16.mxu0 %v510
        %585 = vmatpush1.bf16.msra.mxu0 %v509
        %586 = vmatprep.subr.bf16.mxu0 %v506
        %587 = vmatpush1.bf16.msra.mxu0 %v505
        %588 = vmatprep.subr.bf16.mxu0 %v502
        %589 = vmatpush1.bf16.msra.mxu0 %v501
        %590 = vmatprep.subr.bf16.mxu0 %v498
        %591 = vmatpush1.bf16.msra.mxu0 %v497
        %592 = vmatprep.subr.bf16.mxu0 %v494
        %593 = vmatpush1.bf16.msra.mxu0 %v493
        %594 = vmatprep.subr.bf16.mxu0 %v490
        %595 = vmatpush1.bf16.msra.mxu0 %v489
        %596 = vmatprep.subr.bf16.mxu0 %v486
        %597 = vmatpush1.bf16.msra.mxu0 %v485
        %598 = vmatprep.subr.bf16.mxu0 0
        %599 = vmatpush2.bf16.msra.mxu0 0
        %600 = vmatprep.subr.bf16.mxu0 0
        %601 = vmatpush2.bf16.msra.mxu0 0
        %602 = vmatprep.subr.bf16.mxu0 0
        %603 = vmatpush2.bf16.msra.mxu0 0
        %604 = vmatprep.subr.bf16.mxu0 0
        %605 = vmatpush2.bf16.msra.mxu0 0
        %606 = vmatprep.subr.bf16.mxu0 0
        %607 = vmatpush2.bf16.msra.mxu0 0
        %608 = vmatprep.subr.bf16.mxu0 0
        %609 = vmatpush2.bf16.msra.mxu0 0
        %610 = vmatprep.subr.bf16.mxu0 0
        %611 = vmatpush2.bf16.msra.mxu0 0
        %612 = vmatprep.subr.bf16.mxu0 %v518
        %613 = vmatpush2.bf16.msra.mxu0 %v517
        %614 = vmatprep.mubr.bf16.mxu0 %v559
        %615 = vmatmul.mubr.bf16.gmra.mxu0 %v353
        %v616 = vpop.f32.mrf.mxu0
        %v617 = vadd.f32 0.0, %v616
        %v618 = vpop.f32.mrf.mxu0
        %v619 = vadd.f32 0.0, %v618
        %v620 = vpop.f32.mrf.mxu0
        %v621 = vadd.f32 0.0, %v620
        %v622 = vpop.f32.mrf.mxu0
        %v623 = vadd.f32 0.0, %v622
        %624 = vmatprep.mubr.bf16.mxu0 %v562
        %625 = vmatmul.mubr.bf16.gmra.mxu0 %v355
        %v626 = vpop.f32.mrf.mxu0
        %v627 = vadd.f32 0.0, %v626
        %v628 = vpop.f32.mrf.mxu0
        %v629 = vadd.f32 0.0, %v628
        %v630 = vpop.f32.mrf.mxu0
        %v631 = vadd.f32 0.0, %v630
        %v632 = vpop.f32.mrf.mxu0
        %v633 = vadd.f32 0.0, %v632
        %634 = vmatprep.mubr.bf16.mxu0 %v565
        %635 = vmatmul.mubr.bf16.gmra.mxu0 %v357
        %v636 = vpop.f32.mrf.mxu0
        %v637 = vadd.f32 0.0, %v636
        %v638 = vpop.f32.mrf.mxu0
        %v639 = vadd.f32 0.0, %v638
        %v640 = vpop.f32.mrf.mxu0
        %v641 = vadd.f32 0.0, %v640
        %v642 = vpop.f32.mrf.mxu0
        %v643 = vadd.f32 0.0, %v642
        %644 = vmatprep.mubr.bf16.mxu0 %v568
        %645 = vmatmul.mubr.bf16.gmra.mxu0 %v359
        %v646 = vpop.f32.mrf.mxu0
        %v647 = vadd.f32 0.0, %v646
        %v648 = vpop.f32.mrf.mxu0
        %v649 = vadd.f32 0.0, %v648
        %v650 = vpop.f32.mrf.mxu0
        %v651 = vadd.f32 0.0, %v650
        %v652 = vpop.f32.mrf.mxu0
        %v653 = vadd.f32 0.0, %v652
        %654 = vmatprep.mubr.bf16.mxu0 %v571
        %655 = vmatmul.mubr.bf16.gmra.mxu0 %v361
        %v656 = vpop.f32.mrf.mxu0
        %v657 = vadd.f32 0.0, %v656
        %v658 = vpop.f32.mrf.mxu0
        %v659 = vadd.f32 0.0, %v658
        %v660 = vpop.f32.mrf.mxu0
        %v661 = vadd.f32 0.0, %v660
        %v662 = vpop.f32.mrf.mxu0
        %v663 = vadd.f32 0.0, %v662
        %664 = vmatprep.mubr.bf16.mxu0 %v574
        %665 = vmatmul.mubr.bf16.gmra.mxu0 %v363
        %v666 = vpop.f32.mrf.mxu0
        %v667 = vadd.f32 0.0, %v666
        %v668 = vpop.f32.mrf.mxu0
        %v669 = vadd.f32 0.0, %v668
        %v670 = vpop.f32.mrf.mxu0
        %v671 = vadd.f32 0.0, %v670
        %v672 = vpop.f32.mrf.mxu0
        %v673 = vadd.f32 0.0, %v672
        %674 = vmatprep.mubr.bf16.mxu0 %v577
        %675 = vmatmul.mubr.bf16.gmra.mxu0 %v365
        %v676 = vpop.f32.mrf.mxu0
        %v677 = vadd.f32 0.0, %v676
        %v678 = vpop.f32.mrf.mxu0
        %v679 = vadd.f32 0.0, %v678
        %v680 = vpop.f32.mrf.mxu0
        %v681 = vadd.f32 0.0, %v680
        %v682 = vpop.f32.mrf.mxu0
        %v683 = vadd.f32 0.0, %v682
        %684 = vmatprep.mubr.bf16.mxu0 %v580
        %685 = vmatmul.mubr.bf16.gmra.mxu0 %v367
        %v686 = vpop.f32.mrf.mxu0
        %v687 = vadd.f32 0.0, %v686
        %v688 = vpop.f32.mrf.mxu0
        %v689 = vadd.f32 0.0, %v688
        %v690 = vpop.f32.mrf.mxu0
        %v691 = vadd.f32 0.0, %v690
        %v692 = vpop.f32.mrf.mxu0
        %v693 = vadd.f32 0.0, %v692
        %694 = vdwg.mxu0
        %695 = vmatprep.subr.bf16.mxu0 %v516
        %696 = vmatpush1.bf16.msra.mxu0 %v515
        %697 = vmatprep.subr.bf16.mxu0 %v512
        %698 = vmatpush1.bf16.msra.mxu0 %v511
        %699 = vmatprep.subr.bf16.mxu0 %v508
        %700 = vmatpush1.bf16.msra.mxu0 %v507
        %701 = vmatprep.subr.bf16.mxu0 %v504
        %702 = vmatpush1.bf16.msra.mxu0 %v503
        %703 = vmatprep.subr.bf16.mxu0 %v500
        %704 = vmatpush1.bf16.msra.mxu0 %v499
        %705 = vmatprep.subr.bf16.mxu0 %v496
        %706 = vmatpush1.bf16.msra.mxu0 %v495
        %707 = vmatprep.subr.bf16.mxu0 %v492
        %708 = vmatpush1.bf16.msra.mxu0 %v491
        %709 = vmatprep.subr.bf16.mxu0 %v488
        %710 = vmatpush1.bf16.msra.mxu0 %v487
        %711 = vmatprep.subr.bf16.mxu0 0
        %712 = vmatpush2.bf16.msra.mxu0 0
        %713 = vmatprep.subr.bf16.mxu0 0
        %714 = vmatpush2.bf16.msra.mxu0 0
        %715 = vmatprep.subr.bf16.mxu0 0
        %716 = vmatpush2.bf16.msra.mxu0 0
        %717 = vmatprep.subr.bf16.mxu0 0
        %718 = vmatpush2.bf16.msra.mxu0 0
        %719 = vmatprep.subr.bf16.mxu0 0
        %720 = vmatpush2.bf16.msra.mxu0 0
        %721 = vmatprep.subr.bf16.mxu0 0
        %722 = vmatpush2.bf16.msra.mxu0 0
        %723 = vmatprep.subr.bf16.mxu0 0
        %724 = vmatpush2.bf16.msra.mxu0 0
        %725 = vmatprep.subr.bf16.mxu0 %v520
        %726 = vmatpush2.bf16.msra.mxu0 %v519
        %727 = vmatprep.mubr.bf16.mxu0 %v559
        %728 = vmatmul.mubr.bf16.gmra.mxu0 %v353
        %v729 = vpop.f32.mrf.mxu0
        %v730 = vadd.f32 0.0, %v729
        %v731 = vpop.f32.mrf.mxu0
        %v732 = vadd.f32 0.0, %v731
        %v733 = vpop.f32.mrf.mxu0
        %v734 = vadd.f32 0.0, %v733
        %v735 = vpop.f32.mrf.mxu0
        %v736 = vadd.f32 0.0, %v735
        %737 = vmatprep.mubr.bf16.mxu0 %v562
        %738 = vmatmul.mubr.bf16.gmra.mxu0 %v355
        %v739 = vpop.f32.mrf.mxu0
        %v740 = vadd.f32 0.0, %v739
        %v741 = vpop.f32.mrf.mxu0
        %v742 = vadd.f32 0.0, %v741
        %v743 = vpop.f32.mrf.mxu0
        %v744 = vadd.f32 0.0, %v743
        %v745 = vpop.f32.mrf.mxu0
        %v746 = vadd.f32 0.0, %v745
        %747 = vmatprep.mubr.bf16.mxu0 %v565
        %748 = vmatmul.mubr.bf16.gmra.mxu0 %v357
        %v749 = vpop.f32.mrf.mxu0
        %v750 = vadd.f32 0.0, %v749
        %v751 = vpop.f32.mrf.mxu0
        %v752 = vadd.f32 0.0, %v751
        %v753 = vpop.f32.mrf.mxu0
        %v754 = vadd.f32 0.0, %v753
        %v755 = vpop.f32.mrf.mxu0
        %v756 = vadd.f32 0.0, %v755
        %757 = vmatprep.mubr.bf16.mxu0 %v568
        %758 = vmatmul.mubr.bf16.gmra.mxu0 %v359
        %v759 = vpop.f32.mrf.mxu0
        %v760 = vadd.f32 0.0, %v759
        %v761 = vpop.f32.mrf.mxu0
        %v762 = vadd.f32 0.0, %v761
        %v763 = vpop.f32.mrf.mxu0
        %v764 = vadd.f32 0.0, %v763
        %v765 = vpop.f32.mrf.mxu0
        %v766 = vadd.f32 0.0, %v765
        %767 = vmatprep.mubr.bf16.mxu0 %v571
        %768 = vmatmul.mubr.bf16.gmra.mxu0 %v361
        %v769 = vpop.f32.mrf.mxu0
        %v770 = vadd.f32 0.0, %v769
        %v771 = vpop.f32.mrf.mxu0
        %v772 = vadd.f32 0.0, %v771
        %v773 = vpop.f32.mrf.mxu0
        %v774 = vadd.f32 0.0, %v773
        %v775 = vpop.f32.mrf.mxu0
        %v776 = vadd.f32 0.0, %v775
        %777 = vmatprep.mubr.bf16.mxu0 %v574
        %778 = vmatmul.mubr.bf16.gmra.mxu0 %v363
        %v779 = vpop.f32.mrf.mxu0
        %v780 = vadd.f32 0.0, %v779
        %v781 = vpop.f32.mrf.mxu0
        %v782 = vadd.f32 0.0, %v781
        %v783 = vpop.f32.mrf.mxu0
        %v784 = vadd.f32 0.0, %v783
        %v785 = vpop.f32.mrf.mxu0
        %v786 = vadd.f32 0.0, %v785
        %787 = vmatprep.mubr.bf16.mxu0 %v577
        %788 = vmatmul.mubr.bf16.gmra.mxu0 %v365
        %v789 = vpop.f32.mrf.mxu0
        %v790 = vadd.f32 0.0, %v789
        %v791 = vpop.f32.mrf.mxu0
        %v792 = vadd.f32 0.0, %v791
        %v793 = vpop.f32.mrf.mxu0
        %v794 = vadd.f32 0.0, %v793
        %v795 = vpop.f32.mrf.mxu0
        %v796 = vadd.f32 0.0, %v795
        %797 = vmatprep.mubr.bf16.mxu0 %v580
        %798 = vmatmul.mubr.bf16.gmra.mxu0 %v367
        %v799 = vpop.f32.mrf.mxu0
        %v800 = vadd.f32 0.0, %v799
        %v801 = vpop.f32.mrf.mxu0
        %v802 = vadd.f32 0.0, %v801
        %v803 = vpop.f32.mrf.mxu0
        %v804 = vadd.f32 0.0, %v803
        %v805 = vpop.f32.mrf.mxu0
        %v806 = vadd.f32 0.0, %v805
        %807 = vdwg.mxu0
        %s808 = smul.u32 %s20, 64
        %s809 = smul.addr %s808, 8
        %s810 = scalar_lea.vmem [#allocation2], %s809
        %811 = vst [vmem:[%s810] sm:$0xff] %v617
        %812 = vst [vmem:[%s810 + $0x8] sm:$0xff] %v619
        %813 = vst [vmem:[%s810 + $0x10] sm:$0xff] %v730
        %814 = vst [vmem:[%s810 + $0x18] sm:$0xff] %v732
        %815 = vst [vmem:[%s810 + $0x20] sm:$0xff] %v621
        %816 = vst [vmem:[%s810 + $0x28] sm:$0xff] %v623
        %817 = vst [vmem:[%s810 + $0x30] sm:$0xff] %v734
        %818 = vst [vmem:[%s810 + $0x38] sm:$0xff] %v736
        %819 = vst [vmem:[%s810 + $0x40] sm:$0xff] %v627
        %820 = vst [vmem:[%s810 + $0x48] sm:$0xff] %v629
        %821 = vst [vmem:[%s810 + $0x50] sm:$0xff] %v740
        %822 = vst [vmem:[%s810 + $0x58] sm:$0xff] %v742
        %823 = vst [vmem:[%s810 + $0x60] sm:$0xff] %v631
        %824 = vst [vmem:[%s810 + $0x68] sm:$0xff] %v633
        %825 = vst [vmem:[%s810 + $0x70] sm:$0xff] %v744
        %826 = vst [vmem:[%s810 + $0x78] sm:$0xff] %v746
        %827 = vst [vmem:[%s810 + $0x80] sm:$0xff] %v637
        %828 = vst [vmem:[%s810 + $0x88] sm:$0xff] %v639
        %829 = vst [vmem:[%s810 + $0x90] sm:$0xff] %v750
        %830 = vst [vmem:[%s810 + $0x98] sm:$0xff] %v752
        %831 = vst [vmem:[%s810 + $0xa0] sm:$0xff] %v641
        %832 = vst [vmem:[%s810 + $0xa8] sm:$0xff] %v643
        %833 = vst [vmem:[%s810 + $0xb0] sm:$0xff] %v754
        %834 = vst [vmem:[%s810 + $0xb8] sm:$0xff] %v756
        %835 = vst [vmem:[%s810 + $0xc0] sm:$0xff] %v647
        %836 = vst [vmem:[%s810 + $0xc8] sm:$0xff] %v649
        %837 = vst [vmem:[%s810 + $0xd0] sm:$0xff] %v760
        %838 = vst [vmem:[%s810 + $0xd8] sm:$0xff] %v762
        %839 = vst [vmem:[%s810 + $0xe0] sm:$0xff] %v651
        %840 = vst [vmem:[%s810 + $0xe8] sm:$0xff] %v653
        %841 = vst [vmem:[%s810 + $0xf0] sm:$0xff] %v764
        %842 = vst [vmem:[%s810 + $0xf8] sm:$0xff] %v766
        %843 = vst [vmem:[%s810 + $0x100] sm:$0xff] %v657
        %844 = vst [vmem:[%s810 + $0x108] sm:$0xff] %v659
        %845 = vst [vmem:[%s810 + $0x110] sm:$0xff] %v770
        %846 = vst [vmem:[%s810 + $0x118] sm:$0xff] %v772
        %847 = vst [vmem:[%s810 + $0x120] sm:$0xff] %v661
        %848 = vst [vmem:[%s810 + $0x128] sm:$0xff] %v663
        %849 = vst [vmem:[%s810 + $0x130] sm:$0xff] %v774
        %850 = vst [vmem:[%s810 + $0x138] sm:$0xff] %v776
        %851 = vst [vmem:[%s810 + $0x140] sm:$0xff] %v667
        %852 = vst [vmem:[%s810 + $0x148] sm:$0xff] %v669
        %853 = vst [vmem:[%s810 + $0x150] sm:$0xff] %v780
        %854 = vst [vmem:[%s810 + $0x158] sm:$0xff] %v782
        %855 = vst [vmem:[%s810 + $0x160] sm:$0xff] %v671
        %856 = vst [vmem:[%s810 + $0x168] sm:$0xff] %v673
        %857 = vst [vmem:[%s810 + $0x170] sm:$0xff] %v784
        %858 = vst [vmem:[%s810 + $0x178] sm:$0xff] %v786
        %859 = vst [vmem:[%s810 + $0x180] sm:$0xff] %v677
        %860 = vst [vmem:[%s810 + $0x188] sm:$0xff] %v679
        %861 = vst [vmem:[%s810 + $0x190] sm:$0xff] %v790
        %862 = vst [vmem:[%s810 + $0x198] sm:$0xff] %v792
        %863 = vst [vmem:[%s810 + $0x1a0] sm:$0xff] %v681
        %864 = vst [vmem:[%s810 + $0x1a8] sm:$0xff] %v683
        %865 = vst [vmem:[%s810 + $0x1b0] sm:$0xff] %v794
        %866 = vst [vmem:[%s810 + $0x1b8] sm:$0xff] %v796
        %867 = vst [vmem:[%s810 + $0x1c0] sm:$0xff] %v687
        %868 = vst [vmem:[%s810 + $0x1c8] sm:$0xff] %v689
        %869 = vst [vmem:[%s810 + $0x1d0] sm:$0xff] %v800
        %870 = vst [vmem:[%s810 + $0x1d8] sm:$0xff] %v802
        %871 = vst [vmem:[%s810 + $0x1e0] sm:$0xff] %v691
        %872 = vst [vmem:[%s810 + $0x1e8] sm:$0xff] %v693
        %873 = vst [vmem:[%s810 + $0x1f0] sm:$0xff] %v804
        %874 = vst [vmem:[%s810 + $0x1f8] sm:$0xff] %v806
        %v875 = vadd.f32 %v617, %v621
        %v876 = vadd.f32 %v875, %v627
        %v877 = vadd.f32 %v876, %v631
        %v878 = vadd.f32 %v877, %v637
        %v879 = vadd.f32 %v878, %v641
        %v880 = vadd.f32 %v879, %v647
        %v881 = vadd.f32 %v880, %v651
        %v882 = vadd.f32 %v881, %v657
        %v883 = vadd.f32 %v882, %v661
        %v884 = vadd.f32 %v883, %v667
        %v885 = vadd.f32 %v884, %v671
        %v886 = vadd.f32 %v885, %v677
        %v887 = vadd.f32 %v886, %v681
        %v888 = vadd.f32 %v887, %v687
        %v889 = vadd.f32 %v888, %v691
        %v890 = vrot.slane %v889, 4
        %v891 = vadd.f32 %v889, %v890
        %v892 = vrot.slane %v891, 2
        %v893 = vadd.f32 %v891, %v892
        %v894 = vrot.slane %v893, 1
        %v895 = vadd.f32 %v893, %v894
        %v896 = vadd.f32 %v619, %v623
        %v897 = vadd.f32 %v896, %v629
        %v898 = vadd.f32 %v897, %v633
        %v899 = vadd.f32 %v898, %v639
        %v900 = vadd.f32 %v899, %v643
        %v901 = vadd.f32 %v900, %v649
        %v902 = vadd.f32 %v901, %v653
        %v903 = vadd.f32 %v902, %v659
        %v904 = vadd.f32 %v903, %v663
        %v905 = vadd.f32 %v904, %v669
        %v906 = vadd.f32 %v905, %v673
        %v907 = vadd.f32 %v906, %v679
        %v908 = vadd.f32 %v907, %v683
        %v909 = vadd.f32 %v908, %v689
        %v910 = vadd.f32 %v909, %v693
        %v911 = vrot.slane %v910, 4
        %v912 = vadd.f32 %v910, %v911
        %v913 = vrot.slane %v912, 2
        %v914 = vadd.f32 %v912, %v913
        %v915 = vrot.slane %v914, 1
        %v916 = vadd.f32 %v914, %v915
        %v917 = vadd.f32 %v730, %v734
        %v918 = vadd.f32 %v917, %v740
        %v919 = vadd.f32 %v918, %v744
        %v920 = vadd.f32 %v919, %v750
        %v921 = vadd.f32 %v920, %v754
        %v922 = vadd.f32 %v921, %v760
        %v923 = vadd.f32 %v922, %v764
        %v924 = vadd.f32 %v923, %v770
        %v925 = vadd.f32 %v924, %v774
        %v926 = vadd.f32 %v925, %v780
        %v927 = vadd.f32 %v926, %v784
        %v928 = vadd.f32 %v927, %v790
        %v929 = vadd.f32 %v928, %v794
        %v930 = vadd.f32 %v929, %v800
        %v931 = vadd.f32 %v930, %v804
        %v932 = vrot.slane %v931, 4
        %v933 = vadd.f32 %v931, %v932
        %v934 = vrot.slane %v933, 2
        %v935 = vadd.f32 %v933, %v934
        %v936 = vrot.slane %v935, 1
        %v937 = vadd.f32 %v935, %v936
        %v938 = vadd.f32 %v732, %v736
        %v939 = vadd.f32 %v938, %v742
        %v940 = vadd.f32 %v939, %v746
        %v941 = vadd.f32 %v940, %v752
        %v942 = vadd.f32 %v941, %v756
        %v943 = vadd.f32 %v942, %v762
        %v944 = vadd.f32 %v943, %v766
        %v945 = vadd.f32 %v944, %v772
        %v946 = vadd.f32 %v945, %v776
        %v947 = vadd.f32 %v946, %v782
        %v948 = vadd.f32 %v947, %v786
        %v949 = vadd.f32 %v948, %v792
        %v950 = vadd.f32 %v949, %v796
        %v951 = vadd.f32 %v950, %v802
        %v952 = vadd.f32 %v951, %v806
        %v953 = vrot.slane %v952, 4
        %v954 = vadd.f32 %v952, %v953
        %v955 = vrot.slane %v954, 2
        %v956 = vadd.f32 %v954, %v955
        %v957 = vrot.slane %v956, 1
        %v958 = vadd.f32 %v956, %v957
        %v959 = vld [vmem:[#allocation3] sm:$0x1]
        %v960 = vadd.f32 %v895, %v916
        %v961 = vadd.f32 %v960, %v937
        %v962 = vadd.f32 %v961, %v958
        %v963 = vadd.f32 %v959, %v962
        %964 = vst [vmem:[#allocation3] sm:$0x1] %v963
      $region40: #{unet_innermost_forward.3} parent=35 // pred_fallthru
        _
      %p965 = scmp.eq.s32.totalorder %s19, 1
      // Predicated region
      $region45: #{unet_innermost_forward.3} parent=35 // pred_check
        %p966 = pneg %p965
      $region46: #{unet_innermost_forward.3} parent=35 // pred_check_branch
        %968 = sbr.rel (%p966) target = $region48
      $region47: #{unet_innermost_forward.3} parent=35 // pred_region
        %p969 = scmp.eq.s32.totalorder %s20, 0
        // Predicated region
        $region49: #{unet_innermost_forward.3} parent=47 // pred_check
          %p970 = pneg %p969
        $region50: #{unet_innermost_forward.3} parent=47 // pred_check_branch
          %972 = sbr.rel (%p970) target = $region52
        $region51: #{unet_innermost_forward.3} parent=47 // pred_region
          %v973 = vld [vmem:[#allocation3] sm:$0x1]
          %v974 = vmul.f32 %v973, 0.001953125
          %975 = vst [vmem:[#allocation5] sm:$0x1] %v974
        $region52: #{unet_innermost_forward.3} parent=47 // pred_fallthru
          _
        %s976 = smul.u32 %s20, 64
        %s977 = smul.addr %s976, 8
        %s978 = scalar_lea.vmem [#allocation2], %s977
        %v979 = vld [vmem:[%s978] sm:$0xff]
        %v980 = vld [vmem:[%s978 + $0x8] sm:$0xff]
        %v981 = vld [vmem:[%s978 + $0x10] sm:$0xff]
        %v982 = vld [vmem:[%s978 + $0x18] sm:$0xff]
        %v983 = vld [vmem:[%s978 + $0x20] sm:$0xff]
        %v984 = vld [vmem:[%s978 + $0x28] sm:$0xff]
        %v985 = vld [vmem:[%s978 + $0x30] sm:$0xff]
        %v986 = vld [vmem:[%s978 + $0x38] sm:$0xff]
        %v987 = vld [vmem:[%s978 + $0x40] sm:$0xff]
        %v988 = vld [vmem:[%s978 + $0x48] sm:$0xff]
        %v989 = vld [vmem:[%s978 + $0x50] sm:$0xff]
        %v990 = vld [vmem:[%s978 + $0x58] sm:$0xff]
        %v991 = vld [vmem:[%s978 + $0x60] sm:$0xff]
        %v992 = vld [vmem:[%s978 + $0x68] sm:$0xff]
        %v993 = vld [vmem:[%s978 + $0x70] sm:$0xff]
        %v994 = vld [vmem:[%s978 + $0x78] sm:$0xff]
        %v995 = vld [vmem:[%s978 + $0x80] sm:$0xff]
        %v996 = vld [vmem:[%s978 + $0x88] sm:$0xff]
        %v997 = vld [vmem:[%s978 + $0x90] sm:$0xff]
        %v998 = vld [vmem:[%s978 + $0x98] sm:$0xff]
        %v999 = vld [vmem:[%s978 + $0xa0] sm:$0xff]
        %v1000 = vld [vmem:[%s978 + $0xa8] sm:$0xff]
        %v1001 = vld [vmem:[%s978 + $0xb0] sm:$0xff]
        %v1002 = vld [vmem:[%s978 + $0xb8] sm:$0xff]
        %v1003 = vld [vmem:[%s978 + $0xc0] sm:$0xff]
        %v1004 = vld [vmem:[%s978 + $0xc8] sm:$0xff]
        %v1005 = vld [vmem:[%s978 + $0xd0] sm:$0xff]
        %v1006 = vld [vmem:[%s978 + $0xd8] sm:$0xff]
        %v1007 = vld [vmem:[%s978 + $0xe0] sm:$0xff]
        %v1008 = vld [vmem:[%s978 + $0xe8] sm:$0xff]
        %v1009 = vld [vmem:[%s978 + $0xf0] sm:$0xff]
        %v1010 = vld [vmem:[%s978 + $0xf8] sm:$0xff]
        %v1011 = vld [vmem:[%s978 + $0x100] sm:$0xff]
        %v1012 = vld [vmem:[%s978 + $0x108] sm:$0xff]
        %v1013 = vld [vmem:[%s978 + $0x110] sm:$0xff]
        %v1014 = vld [vmem:[%s978 + $0x118] sm:$0xff]
        %v1015 = vld [vmem:[%s978 + $0x120] sm:$0xff]
        %v1016 = vld [vmem:[%s978 + $0x128] sm:$0xff]
        %v1017 = vld [vmem:[%s978 + $0x130] sm:$0xff]
        %v1018 = vld [vmem:[%s978 + $0x138] sm:$0xff]
        %v1019 = vld [vmem:[%s978 + $0x140] sm:$0xff]
        %v1020 = vld [vmem:[%s978 + $0x148] sm:$0xff]
        %v1021 = vld [vmem:[%s978 + $0x150] sm:$0xff]
        %v1022 = vld [vmem:[%s978 + $0x158] sm:$0xff]
        %v1023 = vld [vmem:[%s978 + $0x160] sm:$0xff]
        %v1024 = vld [vmem:[%s978 + $0x168] sm:$0xff]
        %v1025 = vld [vmem:[%s978 + $0x170] sm:$0xff]
        %v1026 = vld [vmem:[%s978 + $0x178] sm:$0xff]
        %v1027 = vld [vmem:[%s978 + $0x180] sm:$0xff]
        %v1028 = vld [vmem:[%s978 + $0x188] sm:$0xff]
        %v1029 = vld [vmem:[%s978 + $0x190] sm:$0xff]
        %v1030 = vld [vmem:[%s978 + $0x198] sm:$0xff]
        %v1031 = vld [vmem:[%s978 + $0x1a0] sm:$0xff]
        %v1032 = vld [vmem:[%s978 + $0x1a8] sm:$0xff]
        %v1033 = vld [vmem:[%s978 + $0x1b0] sm:$0xff]
        %v1034 = vld [vmem:[%s978 + $0x1b8] sm:$0xff]
        %v1035 = vld [vmem:[%s978 + $0x1c0] sm:$0xff]
        %v1036 = vld [vmem:[%s978 + $0x1c8] sm:$0xff]
        %v1037 = vld [vmem:[%s978 + $0x1d0] sm:$0xff]
        %v1038 = vld [vmem:[%s978 + $0x1d8] sm:$0xff]
        %v1039 = vld [vmem:[%s978 + $0x1e0] sm:$0xff]
        %v1040 = vld [vmem:[%s978 + $0x1e8] sm:$0xff]
        %v1041 = vld [vmem:[%s978 + $0x1f0] sm:$0xff]
        %v1042 = vld [vmem:[%s978 + $0x1f8] sm:$0xff]
        %v1043 = vld [vmem:[#allocation5] sm:$0x1]
        %v1045 = vlaneseq
        %v1046 = vshrl.u32 %v1045, 7
        %v1047 = vsub.s32 0, %v1046
        %v1048 = vrot.slane %v1043, %v1047
        %v1050 = vsub.f32 %v979, %v1048
        %v1051 = vsub.f32 %v983, %v1048
        %v1052 = vsub.f32 %v987, %v1048
        %v1053 = vsub.f32 %v991, %v1048
        %v1054 = vsub.f32 %v995, %v1048
        %v1055 = vsub.f32 %v999, %v1048
        %v1056 = vsub.f32 %v1003, %v1048
        %v1057 = vsub.f32 %v1007, %v1048
        %v1058 = vsub.f32 %v1011, %v1048
        %v1059 = vsub.f32 %v1015, %v1048
        %v1060 = vsub.f32 %v1019, %v1048
        %v1061 = vsub.f32 %v1023, %v1048
        %v1062 = vsub.f32 %v1027, %v1048
        %v1063 = vsub.f32 %v1031, %v1048
        %v1064 = vsub.f32 %v1035, %v1048
        %v1065 = vsub.f32 %v1039, %v1048
        %v1066 = vmul.f32 %v1050, %v1050
        %v1067 = vmul.f32 %v1051, %v1051
        %v1068 = vmul.f32 %v1052, %v1052
        %v1069 = vmul.f32 %v1053, %v1053
        %v1070 = vmul.f32 %v1054, %v1054
        %v1071 = vmul.f32 %v1055, %v1055
        %v1072 = vmul.f32 %v1056, %v1056
        %v1073 = vmul.f32 %v1057, %v1057
        %v1074 = vmul.f32 %v1058, %v1058
        %v1075 = vmul.f32 %v1059, %v1059
        %v1076 = vmul.f32 %v1060, %v1060
        %v1077 = vmul.f32 %v1061, %v1061
        %v1078 = vmul.f32 %v1062, %v1062
        %v1079 = vmul.f32 %v1063, %v1063
        %v1080 = vmul.f32 %v1064, %v1064
        %v1081 = vmul.f32 %v1065, %v1065
        %v1082 = vadd.f32 %v1066, %v1067
        %v1083 = vadd.f32 %v1082, %v1068
        %v1084 = vadd.f32 %v1083, %v1069
        %v1085 = vadd.f32 %v1084, %v1070
        %v1086 = vadd.f32 %v1085, %v1071
        %v1087 = vadd.f32 %v1086, %v1072
        %v1088 = vadd.f32 %v1087, %v1073
        %v1089 = vadd.f32 %v1088, %v1074
        %v1090 = vadd.f32 %v1089, %v1075
        %v1091 = vadd.f32 %v1090, %v1076
        %v1092 = vadd.f32 %v1091, %v1077
        %v1093 = vadd.f32 %v1092, %v1078
        %v1094 = vadd.f32 %v1093, %v1079
        %v1095 = vadd.f32 %v1094, %v1080
        %v1096 = vadd.f32 %v1095, %v1081
        %v1097 = vrot.slane %v1096, 4
        %v1098 = vadd.f32 %v1096, %v1097
        %v1099 = vrot.slane %v1098, 2
        %v1100 = vadd.f32 %v1098, %v1099
        %v1101 = vrot.slane %v1100, 1
        %v1102 = vadd.f32 %v1100, %v1101
        %v1103 = vadd.f32 %v1102, 0.0
        %v1104 = vsub.f32 %v980, %v1048
        %v1105 = vsub.f32 %v984, %v1048
        %v1106 = vsub.f32 %v988, %v1048
        %v1107 = vsub.f32 %v992, %v1048
        %v1108 = vsub.f32 %v996, %v1048
        %v1109 = vsub.f32 %v1000, %v1048
        %v1110 = vsub.f32 %v1004, %v1048
        %v1111 = vsub.f32 %v1008, %v1048
        %v1112 = vsub.f32 %v1012, %v1048
        %v1113 = vsub.f32 %v1016, %v1048
        %v1114 = vsub.f32 %v1020, %v1048
        %v1115 = vsub.f32 %v1024, %v1048
        %v1116 = vsub.f32 %v1028, %v1048
        %v1117 = vsub.f32 %v1032, %v1048
        %v1118 = vsub.f32 %v1036, %v1048
        %v1119 = vsub.f32 %v1040, %v1048
        %v1120 = vmul.f32 %v1104, %v1104
        %v1121 = vmul.f32 %v1105, %v1105
        %v1122 = vmul.f32 %v1106, %v1106
        %v1123 = vmul.f32 %v1107, %v1107
        %v1124 = vmul.f32 %v1108, %v1108
        %v1125 = vmul.f32 %v1109, %v1109
        %v1126 = vmul.f32 %v1110, %v1110
        %v1127 = vmul.f32 %v1111, %v1111
        %v1128 = vmul.f32 %v1112, %v1112
        %v1129 = vmul.f32 %v1113, %v1113
        %v1130 = vmul.f32 %v1114, %v1114
        %v1131 = vmul.f32 %v1115, %v1115
        %v1132 = vmul.f32 %v1116, %v1116
        %v1133 = vmul.f32 %v1117, %v1117
        %v1134 = vmul.f32 %v1118, %v1118
        %v1135 = vmul.f32 %v1119, %v1119
        %v1136 = vadd.f32 %v1120, %v1121
        %v1137 = vadd.f32 %v1136, %v1122
        %v1138 = vadd.f32 %v1137, %v1123
        %v1139 = vadd.f32 %v1138, %v1124
        %v1140 = vadd.f32 %v1139, %v1125
        %v1141 = vadd.f32 %v1140, %v1126
        %v1142 = vadd.f32 %v1141, %v1127
        %v1143 = vadd.f32 %v1142, %v1128
        %v1144 = vadd.f32 %v1143, %v1129
        %v1145 = vadd.f32 %v1144, %v1130
        %v1146 = vadd.f32 %v1145, %v1131
        %v1147 = vadd.f32 %v1146, %v1132
        %v1148 = vadd.f32 %v1147, %v1133
        %v1149 = vadd.f32 %v1148, %v1134
        %v1150 = vadd.f32 %v1149, %v1135
        %v1151 = vrot.slane %v1150, 4
        %v1152 = vadd.f32 %v1150, %v1151
        %v1153 = vrot.slane %v1152, 2
        %v1154 = vadd.f32 %v1152, %v1153
        %v1155 = vrot.slane %v1154, 1
        %v1156 = vadd.f32 %v1154, %v1155
        %v1157 = vadd.f32 %v1103, %v1156
        %v1158 = vsub.f32 %v981, %v1048
        %v1159 = vsub.f32 %v985, %v1048
        %v1160 = vsub.f32 %v989, %v1048
        %v1161 = vsub.f32 %v993, %v1048
        %v1162 = vsub.f32 %v997, %v1048
        %v1163 = vsub.f32 %v1001, %v1048
        %v1164 = vsub.f32 %v1005, %v1048
        %v1165 = vsub.f32 %v1009, %v1048
        %v1166 = vsub.f32 %v1013, %v1048
        %v1167 = vsub.f32 %v1017, %v1048
        %v1168 = vsub.f32 %v1021, %v1048
        %v1169 = vsub.f32 %v1025, %v1048
        %v1170 = vsub.f32 %v1029, %v1048
        %v1171 = vsub.f32 %v1033, %v1048
        %v1172 = vsub.f32 %v1037, %v1048
        %v1173 = vsub.f32 %v1041, %v1048
        %v1174 = vmul.f32 %v1158, %v1158
        %v1175 = vmul.f32 %v1159, %v1159
        %v1176 = vmul.f32 %v1160, %v1160
        %v1177 = vmul.f32 %v1161, %v1161
        %v1178 = vmul.f32 %v1162, %v1162
        %v1179 = vmul.f32 %v1163, %v1163
        %v1180 = vmul.f32 %v1164, %v1164
        %v1181 = vmul.f32 %v1165, %v1165
        %v1182 = vmul.f32 %v1166, %v1166
        %v1183 = vmul.f32 %v1167, %v1167
        %v1184 = vmul.f32 %v1168, %v1168
        %v1185 = vmul.f32 %v1169, %v1169
        %v1186 = vmul.f32 %v1170, %v1170
        %v1187 = vmul.f32 %v1171, %v1171
        %v1188 = vmul.f32 %v1172, %v1172
        %v1189 = vmul.f32 %v1173, %v1173
        %v1190 = vadd.f32 %v1174, %v1175
        %v1191 = vadd.f32 %v1190, %v1176
        %v1192 = vadd.f32 %v1191, %v1177
        %v1193 = vadd.f32 %v1192, %v1178
        %v1194 = vadd.f32 %v1193, %v1179
        %v1195 = vadd.f32 %v1194, %v1180
        %v1196 = vadd.f32 %v1195, %v1181
        %v1197 = vadd.f32 %v1196, %v1182
        %v1198 = vadd.f32 %v1197, %v1183
        %v1199 = vadd.f32 %v1198, %v1184
        %v1200 = vadd.f32 %v1199, %v1185
        %v1201 = vadd.f32 %v1200, %v1186
        %v1202 = vadd.f32 %v1201, %v1187
        %v1203 = vadd.f32 %v1202, %v1188
        %v1204 = vadd.f32 %v1203, %v1189
        %v1205 = vrot.slane %v1204, 4
        %v1206 = vadd.f32 %v1204, %v1205
        %v1207 = vrot.slane %v1206, 2
        %v1208 = vadd.f32 %v1206, %v1207
        %v1209 = vrot.slane %v1208, 1
        %v1210 = vadd.f32 %v1208, %v1209
        %v1211 = vadd.f32 %v1157, %v1210
        %v1212 = vsub.f32 %v982, %v1048
        %v1213 = vsub.f32 %v986, %v1048
        %v1214 = vsub.f32 %v990, %v1048
        %v1215 = vsub.f32 %v994, %v1048
        %v1216 = vsub.f32 %v998, %v1048
        %v1217 = vsub.f32 %v1002, %v1048
        %v1218 = vsub.f32 %v1006, %v1048
        %v1219 = vsub.f32 %v1010, %v1048
        %v1220 = vsub.f32 %v1014, %v1048
        %v1221 = vsub.f32 %v1018, %v1048
        %v1222 = vsub.f32 %v1022, %v1048
        %v1223 = vsub.f32 %v1026, %v1048
        %v1224 = vsub.f32 %v1030, %v1048
        %v1225 = vsub.f32 %v1034, %v1048
        %v1226 = vsub.f32 %v1038, %v1048
        %v1227 = vsub.f32 %v1042, %v1048
        %v1228 = vmul.f32 %v1212, %v1212
        %v1229 = vmul.f32 %v1213, %v1213
        %v1230 = vmul.f32 %v1214, %v1214
        %v1231 = vmul.f32 %v1215, %v1215
        %v1232 = vmul.f32 %v1216, %v1216
        %v1233 = vmul.f32 %v1217, %v1217
        %v1234 = vmul.f32 %v1218, %v1218
        %v1235 = vmul.f32 %v1219, %v1219
        %v1236 = vmul.f32 %v1220, %v1220
        %v1237 = vmul.f32 %v1221, %v1221
        %v1238 = vmul.f32 %v1222, %v1222
        %v1239 = vmul.f32 %v1223, %v1223
        %v1240 = vmul.f32 %v1224, %v1224
        %v1241 = vmul.f32 %v1225, %v1225
        %v1242 = vmul.f32 %v1226, %v1226
        %v1243 = vmul.f32 %v1227, %v1227
        %v1244 = vadd.f32 %v1228, %v1229
        %v1245 = vadd.f32 %v1244, %v1230
        %v1246 = vadd.f32 %v1245, %v1231
        %v1247 = vadd.f32 %v1246, %v1232
        %v1248 = vadd.f32 %v1247, %v1233
        %v1249 = vadd.f32 %v1248, %v1234
        %v1250 = vadd.f32 %v1249, %v1235
        %v1251 = vadd.f32 %v1250, %v1236
        %v1252 = vadd.f32 %v1251, %v1237
        %v1253 = vadd.f32 %v1252, %v1238
        %v1254 = vadd.f32 %v1253, %v1239
        %v1255 = vadd.f32 %v1254, %v1240
        %v1256 = vadd.f32 %v1255, %v1241
        %v1257 = vadd.f32 %v1256, %v1242
        %v1258 = vadd.f32 %v1257, %v1243
        %v1259 = vrot.slane %v1258, 4
        %v1260 = vadd.f32 %v1258, %v1259
        %v1261 = vrot.slane %v1260, 2
        %v1262 = vadd.f32 %v1260, %v1261
        %v1263 = vrot.slane %v1262, 1
        %v1264 = vadd.f32 %v1262, %v1263
        %v1265 = vadd.f32 %v1211, %v1264
        %v1266 = vld [vmem:[#allocation4] sm:$0x1]
        %v1267 = vadd.f32 %v1266, %v1265
        %1268 = vst [vmem:[#allocation4] sm:$0x1] %v1267
      $region48: #{unet_innermost_forward.3} parent=35 // pred_fallthru
        _
      %p1269 = scmp.eq.s32.totalorder %s19, 2
      // Predicated region
      $region53: #{unet_innermost_forward.3} parent=35 // pred_check
        %p1270 = pneg %p1269
      $region54: #{unet_innermost_forward.3} parent=35 // pred_check_branch
        %1272 = sbr.rel (%p1270) target = $region56
      $region55: #{unet_innermost_forward.3} parent=35 // pred_region
        %p1273 = scmp.eq.s32.totalorder %s20, 0
        // Predicated region
        $region57: #{unet_innermost_forward.3} parent=55 // pred_check
          %p1274 = pneg %p1273
        $region58: #{unet_innermost_forward.3} parent=55 // pred_check_branch
          %1276 = sbr.rel (%p1274) target = $region60
        $region59: #{unet_innermost_forward.3} parent=55 // pred_region
          %v1277 = vld [vmem:[#allocation4] sm:$0x1]
          %v1278 = vmul.f32 %v1277, 0.001953125
          %v1279 = vld [vmem:[%s2] sm:$0x1]
          %v1280 = vadd.f32 %v1278, 1e-05
          %v1281 = vrsqrt.pop %v1280
          %v1282 = vmul.f32 %v1279, %v1281
          %1283 = vst [vmem:[#allocation6] sm:$0x1] %v1282
          %v1284 = vld [vmem:[%s3] sm:$0x1]
          %v1285 = vld [vmem:[#allocation5] sm:$0x1]
          %v1286 = vmul.f32 %v1285, %v1282
          %v1287 = vsub.f32 %v1284, %v1286
          %1288 = vst [vmem:[#allocation7] sm:$0x1] %v1287
        $region60: #{unet_innermost_forward.3} parent=55 // pred_fallthru
          _
        %s1289 = smul.u32 %s20, 64
        %s1290 = smul.addr %s1289, 8
        %s1291 = scalar_lea.vmem [#allocation2], %s1290
        %v1292 = vld [vmem:[%s1291] sm:$0xff]
        %v1293 = vld [vmem:[%s1291 + $0x8] sm:$0xff]
        %v1294 = vld [vmem:[%s1291 + $0x10] sm:$0xff]
        %v1295 = vld [vmem:[%s1291 + $0x18] sm:$0xff]
        %v1296 = vld [vmem:[%s1291 + $0x20] sm:$0xff]
        %v1297 = vld [vmem:[%s1291 + $0x28] sm:$0xff]
        %v1298 = vld [vmem:[%s1291 + $0x30] sm:$0xff]
        %v1299 = vld [vmem:[%s1291 + $0x38] sm:$0xff]
        %v1300 = vld [vmem:[%s1291 + $0x40] sm:$0xff]
        %v1301 = vld [vmem:[%s1291 + $0x48] sm:$0xff]
        %v1302 = vld [vmem:[%s1291 + $0x50] sm:$0xff]
        %v1303 = vld [vmem:[%s1291 + $0x58] sm:$0xff]
        %v1304 = vld [vmem:[%s1291 + $0x60] sm:$0xff]
        %v1305 = vld [vmem:[%s1291 + $0x68] sm:$0xff]
        %v1306 = vld [vmem:[%s1291 + $0x70] sm:$0xff]
        %v1307 = vld [vmem:[%s1291 + $0x78] sm:$0xff]
        %v1308 = vld [vmem:[%s1291 + $0x80] sm:$0xff]
        %v1309 = vld [vmem:[%s1291 + $0x88] sm:$0xff]
        %v1310 = vld [vmem:[%s1291 + $0x90] sm:$0xff]
        %v1311 = vld [vmem:[%s1291 + $0x98] sm:$0xff]
        %v1312 = vld [vmem:[%s1291 + $0xa0] sm:$0xff]
        %v1313 = vld [vmem:[%s1291 + $0xa8] sm:$0xff]
        %v1314 = vld [vmem:[%s1291 + $0xb0] sm:$0xff]
        %v1315 = vld [vmem:[%s1291 + $0xb8] sm:$0xff]
        %v1316 = vld [vmem:[%s1291 + $0xc0] sm:$0xff]
        %v1317 = vld [vmem:[%s1291 + $0xc8] sm:$0xff]
        %v1318 = vld [vmem:[%s1291 + $0xd0] sm:$0xff]
        %v1319 = vld [vmem:[%s1291 + $0xd8] sm:$0xff]
        %v1320 = vld [vmem:[%s1291 + $0xe0] sm:$0xff]
        %v1321 = vld [vmem:[%s1291 + $0xe8] sm:$0xff]
        %v1322 = vld [vmem:[%s1291 + $0xf0] sm:$0xff]
        %v1323 = vld [vmem:[%s1291 + $0xf8] sm:$0xff]
        %v1324 = vld [vmem:[%s1291 + $0x100] sm:$0xff]
        %v1325 = vld [vmem:[%s1291 + $0x108] sm:$0xff]
        %v1326 = vld [vmem:[%s1291 + $0x110] sm:$0xff]
        %v1327 = vld [vmem:[%s1291 + $0x118] sm:$0xff]
        %v1328 = vld [vmem:[%s1291 + $0x120] sm:$0xff]
        %v1329 = vld [vmem:[%s1291 + $0x128] sm:$0xff]
        %v1330 = vld [vmem:[%s1291 + $0x130] sm:$0xff]
        %v1331 = vld [vmem:[%s1291 + $0x138] sm:$0xff]
        %v1332 = vld [vmem:[%s1291 + $0x140] sm:$0xff]
        %v1333 = vld [vmem:[%s1291 + $0x148] sm:$0xff]
        %v1334 = vld [vmem:[%s1291 + $0x150] sm:$0xff]
        %v1335 = vld [vmem:[%s1291 + $0x158] sm:$0xff]
        %v1336 = vld [vmem:[%s1291 + $0x160] sm:$0xff]
        %v1337 = vld [vmem:[%s1291 + $0x168] sm:$0xff]
        %v1338 = vld [vmem:[%s1291 + $0x170] sm:$0xff]
        %v1339 = vld [vmem:[%s1291 + $0x178] sm:$0xff]
        %v1340 = vld [vmem:[%s1291 + $0x180] sm:$0xff]
        %v1341 = vld [vmem:[%s1291 + $0x188] sm:$0xff]
        %v1342 = vld [vmem:[%s1291 + $0x190] sm:$0xff]
        %v1343 = vld [vmem:[%s1291 + $0x198] sm:$0xff]
        %v1344 = vld [vmem:[%s1291 + $0x1a0] sm:$0xff]
        %v1345 = vld [vmem:[%s1291 + $0x1a8] sm:$0xff]
        %v1346 = vld [vmem:[%s1291 + $0x1b0] sm:$0xff]
        %v1347 = vld [vmem:[%s1291 + $0x1b8] sm:$0xff]
        %v1348 = vld [vmem:[%s1291 + $0x1c0] sm:$0xff]
        %v1349 = vld [vmem:[%s1291 + $0x1c8] sm:$0xff]
        %v1350 = vld [vmem:[%s1291 + $0x1d0] sm:$0xff]
        %v1351 = vld [vmem:[%s1291 + $0x1d8] sm:$0xff]
        %v1352 = vld [vmem:[%s1291 + $0x1e0] sm:$0xff]
        %v1353 = vld [vmem:[%s1291 + $0x1e8] sm:$0xff]
        %v1354 = vld [vmem:[%s1291 + $0x1f0] sm:$0xff]
        %v1355 = vld [vmem:[%s1291 + $0x1f8] sm:$0xff]
        %v1356 = vld [vmem:[#allocation6] sm:$0x1]
        %v1357 = vld [vmem:[#allocation7] sm:$0x1]
        %v1359 = vlaneseq
        %v1360 = vshrl.u32 %v1359, 7
        %v1361 = vsub.s32 0, %v1360
        %v1362 = vrot.slane %v1356, %v1361
        %v1364 = vmul.f32 %v1292, %v1362
        %v1365 = vmul.f32 %v1296, %v1362
        %v1366 = vmul.f32 %v1300, %v1362
        %v1367 = vmul.f32 %v1304, %v1362
        %v1368 = vmul.f32 %v1308, %v1362
        %v1369 = vmul.f32 %v1312, %v1362
        %v1370 = vmul.f32 %v1316, %v1362
        %v1371 = vmul.f32 %v1320, %v1362
        %v1372 = vmul.f32 %v1324, %v1362
        %v1373 = vmul.f32 %v1328, %v1362
        %v1374 = vmul.f32 %v1332, %v1362
        %v1375 = vmul.f32 %v1336, %v1362
        %v1376 = vmul.f32 %v1340, %v1362
        %v1377 = vmul.f32 %v1344, %v1362
        %v1378 = vmul.f32 %v1348, %v1362
        %v1379 = vmul.f32 %v1352, %v1362
        %v1381 = vlaneseq
        %v1382 = vshrl.u32 %v1381, 7
        %v1383 = vsub.s32 0, %v1382
        %v1384 = vrot.slane %v1357, %v1383
        %v1386 = vadd.f32 %v1364, %v1384
        %v1387 = vadd.f32 %v1365, %v1384
        %v1388 = vadd.f32 %v1366, %v1384
        %v1389 = vadd.f32 %v1367, %v1384
        %v1390 = vadd.f32 %v1368, %v1384
        %v1391 = vadd.f32 %v1369, %v1384
        %v1392 = vadd.f32 %v1370, %v1384
        %v1393 = vadd.f32 %v1371, %v1384
        %v1394 = vadd.f32 %v1372, %v1384
        %v1395 = vadd.f32 %v1373, %v1384
        %v1396 = vadd.f32 %v1374, %v1384
        %v1397 = vadd.f32 %v1375, %v1384
        %v1398 = vadd.f32 %v1376, %v1384
        %v1399 = vadd.f32 %v1377, %v1384
        %v1400 = vadd.f32 %v1378, %v1384
        %v1401 = vadd.f32 %v1379, %v1384
        %1402 = vst [vmem:[%s238] sm:$0xff] %v1386
        %1403 = vst [vmem:[%s238 + $0x20] sm:$0xff] %v1387
        %1404 = vst [vmem:[%s238 + $0x40] sm:$0xff] %v1388
        %1405 = vst [vmem:[%s238 + $0x60] sm:$0xff] %v1389
        %1406 = vst [vmem:[%s238 + $0x80] sm:$0xff] %v1390
        %1407 = vst [vmem:[%s238 + $0xa0] sm:$0xff] %v1391
        %1408 = vst [vmem:[%s238 + $0xc0] sm:$0xff] %v1392
        %1409 = vst [vmem:[%s238 + $0xe0] sm:$0xff] %v1393
        %1410 = vst [vmem:[%s238 + $0x100] sm:$0xff] %v1394
        %1411 = vst [vmem:[%s238 + $0x120] sm:$0xff] %v1395
        %1412 = vst [vmem:[%s238 + $0x140] sm:$0xff] %v1396
        %1413 = vst [vmem:[%s238 + $0x160] sm:$0xff] %v1397
        %1414 = vst [vmem:[%s238 + $0x180] sm:$0xff] %v1398
        %1415 = vst [vmem:[%s238 + $0x1a0] sm:$0xff] %v1399
        %1416 = vst [vmem:[%s238 + $0x1c0] sm:$0xff] %v1400
        %1417 = vst [vmem:[%s238 + $0x1e0] sm:$0xff] %v1401
        %v1418 = vmul.f32 %v1293, %v1362
        %v1419 = vmul.f32 %v1297, %v1362
        %v1420 = vmul.f32 %v1301, %v1362
        %v1421 = vmul.f32 %v1305, %v1362
        %v1422 = vmul.f32 %v1309, %v1362
        %v1423 = vmul.f32 %v1313, %v1362
        %v1424 = vmul.f32 %v1317, %v1362
        %v1425 = vmul.f32 %v1321, %v1362
        %v1426 = vmul.f32 %v1325, %v1362
        %v1427 = vmul.f32 %v1329, %v1362
        %v1428 = vmul.f32 %v1333, %v1362
        %v1429 = vmul.f32 %v1337, %v1362
        %v1430 = vmul.f32 %v1341, %v1362
        %v1431 = vmul.f32 %v1345, %v1362
        %v1432 = vmul.f32 %v1349, %v1362
        %v1433 = vmul.f32 %v1353, %v1362
        %v1434 = vadd.f32 %v1418, %v1384
        %v1435 = vadd.f32 %v1419, %v1384
        %v1436 = vadd.f32 %v1420, %v1384
        %v1437 = vadd.f32 %v1421, %v1384
        %v1438 = vadd.f32 %v1422, %v1384
        %v1439 = vadd.f32 %v1423, %v1384
        %v1440 = vadd.f32 %v1424, %v1384
        %v1441 = vadd.f32 %v1425, %v1384
        %v1442 = vadd.f32 %v1426, %v1384
        %v1443 = vadd.f32 %v1427, %v1384
        %v1444 = vadd.f32 %v1428, %v1384
        %v1445 = vadd.f32 %v1429, %v1384
        %v1446 = vadd.f32 %v1430, %v1384
        %v1447 = vadd.f32 %v1431, %v1384
        %v1448 = vadd.f32 %v1432, %v1384
        %v1449 = vadd.f32 %v1433, %v1384
        %1450 = vst [vmem:[%s238 + $0x8] sm:$0xff] %v1434
        %1451 = vst [vmem:[%s238 + $0x28] sm:$0xff] %v1435
        %1452 = vst [vmem:[%s238 + $0x48] sm:$0xff] %v1436
        %1453 = vst [vmem:[%s238 + $0x68] sm:$0xff] %v1437
        %1454 = vst [vmem:[%s238 + $0x88] sm:$0xff] %v1438
        %1455 = vst [vmem:[%s238 + $0xa8] sm:$0xff] %v1439
        %1456 = vst [vmem:[%s238 + $0xc8] sm:$0xff] %v1440
        %1457 = vst [vmem:[%s238 + $0xe8] sm:$0xff] %v1441
        %1458 = vst [vmem:[%s238 + $0x108] sm:$0xff] %v1442
        %1459 = vst [vmem:[%s238 + $0x128] sm:$0xff] %v1443
        %1460 = vst [vmem:[%s238 + $0x148] sm:$0xff] %v1444
        %1461 = vst [vmem:[%s238 + $0x168] sm:$0xff] %v1445
        %1462 = vst [vmem:[%s238 + $0x188] sm:$0xff] %v1446
        %1463 = vst [vmem:[%s238 + $0x1a8] sm:$0xff] %v1447
        %1464 = vst [vmem:[%s238 + $0x1c8] sm:$0xff] %v1448
        %1465 = vst [vmem:[%s238 + $0x1e8] sm:$0xff] %v1449
        %v1466 = vmul.f32 %v1294, %v1362
        %v1467 = vmul.f32 %v1298, %v1362
        %v1468 = vmul.f32 %v1302, %v1362
        %v1469 = vmul.f32 %v1306, %v1362
        %v1470 = vmul.f32 %v1310, %v1362
        %v1471 = vmul.f32 %v1314, %v1362
        %v1472 = vmul.f32 %v1318, %v1362
        %v1473 = vmul.f32 %v1322, %v1362
        %v1474 = vmul.f32 %v1326, %v1362
        %v1475 = vmul.f32 %v1330, %v1362
        %v1476 = vmul.f32 %v1334, %v1362
        %v1477 = vmul.f32 %v1338, %v1362
        %v1478 = vmul.f32 %v1342, %v1362
        %v1479 = vmul.f32 %v1346, %v1362
        %v1480 = vmul.f32 %v1350, %v1362
        %v1481 = vmul.f32 %v1354, %v1362
        %v1482 = vadd.f32 %v1466, %v1384
        %v1483 = vadd.f32 %v1467, %v1384
        %v1484 = vadd.f32 %v1468, %v1384
        %v1485 = vadd.f32 %v1469, %v1384
        %v1486 = vadd.f32 %v1470, %v1384
        %v1487 = vadd.f32 %v1471, %v1384
        %v1488 = vadd.f32 %v1472, %v1384
        %v1489 = vadd.f32 %v1473, %v1384
        %v1490 = vadd.f32 %v1474, %v1384
        %v1491 = vadd.f32 %v1475, %v1384
        %v1492 = vadd.f32 %v1476, %v1384
        %v1493 = vadd.f32 %v1477, %v1384
        %v1494 = vadd.f32 %v1478, %v1384
        %v1495 = vadd.f32 %v1479, %v1384
        %v1496 = vadd.f32 %v1480, %v1384
        %v1497 = vadd.f32 %v1481, %v1384
        %1498 = vst [vmem:[%s238 + $0x10] sm:$0xff] %v1482
        %1499 = vst [vmem:[%s238 + $0x30] sm:$0xff] %v1483
        %1500 = vst [vmem:[%s238 + $0x50] sm:$0xff] %v1484
        %1501 = vst [vmem:[%s238 + $0x70] sm:$0xff] %v1485
        %1502 = vst [vmem:[%s238 + $0x90] sm:$0xff] %v1486
        %1503 = vst [vmem:[%s238 + $0xb0] sm:$0xff] %v1487
        %1504 = vst [vmem:[%s238 + $0xd0] sm:$0xff] %v1488
        %1505 = vst [vmem:[%s238 + $0xf0] sm:$0xff] %v1489
        %1506 = vst [vmem:[%s238 + $0x110] sm:$0xff] %v1490
        %1507 = vst [vmem:[%s238 + $0x130] sm:$0xff] %v1491
        %1508 = vst [vmem:[%s238 + $0x150] sm:$0xff] %v1492
        %1509 = vst [vmem:[%s238 + $0x170] sm:$0xff] %v1493
        %1510 = vst [vmem:[%s238 + $0x190] sm:$0xff] %v1494
        %1511 = vst [vmem:[%s238 + $0x1b0] sm:$0xff] %v1495
        %1512 = vst [vmem:[%s238 + $0x1d0] sm:$0xff] %v1496
        %1513 = vst [vmem:[%s238 + $0x1f0] sm:$0xff] %v1497
        %v1514 = vmul.f32 %v1295, %v1362
        %v1515 = vmul.f32 %v1299, %v1362
        %v1516 = vmul.f32 %v1303, %v1362
        %v1517 = vmul.f32 %v1307, %v1362
        %v1518 = vmul.f32 %v1311, %v1362
        %v1519 = vmul.f32 %v1315, %v1362
        %v1520 = vmul.f32 %v1319, %v1362
        %v1521 = vmul.f32 %v1323, %v1362
        %v1522 = vmul.f32 %v1327, %v1362
        %v1523 = vmul.f32 %v1331, %v1362
        %v1524 = vmul.f32 %v1335, %v1362
        %v1525 = vmul.f32 %v1339, %v1362
        %v1526 = vmul.f32 %v1343, %v1362
        %v1527 = vmul.f32 %v1347, %v1362
        %v1528 = vmul.f32 %v1351, %v1362
        %v1529 = vmul.f32 %v1355, %v1362
        %v1530 = vadd.f32 %v1514, %v1384
        %v1531 = vadd.f32 %v1515, %v1384
        %v1532 = vadd.f32 %v1516, %v1384
        %v1533 = vadd.f32 %v1517, %v1384
        %v1534 = vadd.f32 %v1518, %v1384
        %v1535 = vadd.f32 %v1519, %v1384
        %v1536 = vadd.f32 %v1520, %v1384
        %v1537 = vadd.f32 %v1521, %v1384
        %v1538 = vadd.f32 %v1522, %v1384
        %v1539 = vadd.f32 %v1523, %v1384
        %v1540 = vadd.f32 %v1524, %v1384
        %v1541 = vadd.f32 %v1525, %v1384
        %v1542 = vadd.f32 %v1526, %v1384
        %v1543 = vadd.f32 %v1527, %v1384
        %v1544 = vadd.f32 %v1528, %v1384
        %v1545 = vadd.f32 %v1529, %v1384
        %1546 = vst [vmem:[%s238 + $0x18] sm:$0xff] %v1530
        %1547 = vst [vmem:[%s238 + $0x38] sm:$0xff] %v1531
        %1548 = vst [vmem:[%s238 + $0x58] sm:$0xff] %v1532
        %1549 = vst [vmem:[%s238 + $0x78] sm:$0xff] %v1533
        %1550 = vst [vmem:[%s238 + $0x98] sm:$0xff] %v1534
        %1551 = vst [vmem:[%s238 + $0xb8] sm:$0xff] %v1535
        %1552 = vst [vmem:[%s238 + $0xd8] sm:$0xff] %v1536
        %1553 = vst [vmem:[%s238 + $0xf8] sm:$0xff] %v1537
        %1554 = vst [vmem:[%s238 + $0x118] sm:$0xff] %v1538
        %1555 = vst [vmem:[%s238 + $0x138] sm:$0xff] %v1539
        %1556 = vst [vmem:[%s238 + $0x158] sm:$0xff] %v1540
        %1557 = vst [vmem:[%s238 + $0x178] sm:$0xff] %v1541
        %1558 = vst [vmem:[%s238 + $0x198] sm:$0xff] %v1542
        %1559 = vst [vmem:[%s238 + $0x1b8] sm:$0xff] %v1543
        %1560 = vst [vmem:[%s238 + $0x1d8] sm:$0xff] %v1544
        %1561 = vst [vmem:[%s238 + $0x1f8] sm:$0xff] %v1545
      $region56: #{unet_innermost_forward.3} parent=35 // pred_fallthru
        _
      %p1562 = scmp.eq.s32.totalorder %s19, 2
      %s1563 = scalar_select %p1562, %s20, 0
      %s1564 = smul.u32 16, %s1563
      %p1565 = scmp.lt.s32.totalorder %s1564, 15
      %s1566 = scalar_select %p1565, %s1564, 15
      %s1567 = smul.addr %s1566, 4
      %s1568 = smul.addr %s1567, 8
      %s1569 = scalar_lea.vmem %s4, %s1568
      // Predicated region
      $region61: #{unet_innermost_forward.3} parent=35 // pred_check
        %p1570 = pneg %p142
      $region62: #{unet_innermost_forward.3} parent=35 // pred_check_branch
        %1572 = sbr.rel (%p1570) target = $region64
      $region63: #{unet_innermost_forward.3} parent=35 // pred_region
        %p1573 = scmp.eq.s32.totalorder %s19, 2
        %s1574 = scalar_select %p1573, %s20, 0
        %s1575 = smul.u32 16, %s1574
      $region64: #{unet_innermost_forward.3} parent=35 // pred_fallthru
        _
    $region36: #{unet_innermost_forward.3} parent=5 // pred_fallthru
      _
    %p1576 = scmp.le.s32.totalorder 2, %s10
    // Predicated region
    $region65: #{unet_innermost_forward.3} parent=5 // pred_check
      %p1577 = pneg %p1576
    $region66: #{unet_innermost_forward.3} parent=5 // pred_check_branch
      %1579 = sbr.rel (%p1577) target = $region68
    $region67: #{unet_innermost_forward.3} parent=5 // pred_region
      %s1580 = ssub.s32 %s10, 2
      // Predicated region
      $region69: #{unet_innermost_forward.3} parent=67 // pred_check
        %p1581 = pneg %p148
      $region70: #{unet_innermost_forward.3} parent=67 // pred_check_branch
        %1583 = sbr.rel (%p1581) target = $region72
      $region71: #{unet_innermost_forward.3} parent=67 // pred_region
        %p1584 = scmp.eq.s32.totalorder %s21, 2
        %s1585 = scalar_select %p1584, %s22, 0
        %s1586 = smul.u32 16, %s1585
        %p1587 = scmp.lt.s32.totalorder %s1586, 15
        %s1588 = scalar_select %p1587, %s1586, 15
        %s1589 = smul.addr %s1588, 4
        %s1590 = smul.addr %s1589, 8
        %s1591 = scalar_lea.vmem %s4, %s1590
      $region72: #{unet_innermost_forward.3} parent=67 // pred_fallthru
        _
    $region68: #{unet_innermost_forward.3} parent=5 // pred_fallthru
      _
  $region6: #{unet_innermost_forward.3} parent=0 // loop_footer
    %s14 = sadd.s32 1, %s10
  $region7: #{unet_innermost_forward.3} parent=0 // loop_footer_branch
    %9 = sbr.rel target = $region3
  $region8: #{unet_innermost_forward.3} parent=0 // loop_exit
    _

</llo_original>
